<compile_context>
chip_gen: v6e
topology: v6e:2x2x1
jax: 0.10.0
libtpu: 0.0.40
codegen_flags: <defaults>
</compile_context>

<pallas_src>
import jax
import jax.numpy as jnp
from jax.experimental import pallas as pl
from jax.experimental.pallas import tpu as pltpu


def _gwk_head(head_ft, al_row, ar_row, cat):
    """One GWK attention head. head_ft: (N,H); al_row/ar_row: (1,H); cat: (N,N)."""
    # a1[i] = <head_ft[i,:], attn_l>  -> VPU multiply + lane reduce (no skinny MXU matmul)
    a1 = jnp.sum(head_ft * al_row, axis=1, keepdims=True)                 # (N, 1)
    # a2 as a lane row directly: (1,H) x (N,H)^T contraction (q @ k.T pattern), avoids
    # an explicit (N,1)->(1,N) transpose/relayout.
    a2 = jax.lax.dot_general(ar_row, head_ft,
                             (((1,), (1,)), ((), ())),
                             preferred_element_type=jnp.float32)          # (1, N)
    a = a1 + a2                                                           # (N, N)
    a = jnp.maximum(a, 0.2 * a)                                           # LeakyReLU(0.2)
    a_nomi = jnp.exp(a) * cat
    a_deno = jnp.sum(a_nomi, axis=1, keepdims=True)
    a_nor = a_nomi / (a_deno + 1e-9)
    ret = jnp.dot(a_nor, head_ft, preferred_element_type=jnp.float32)     # (N, H) MXU
    # ELU(alpha=1); clamp exp arg so the unselected branch never overflows
    return jnp.where(ret > 0.0, ret, jnp.exp(jnp.minimum(ret, 0.0)) - 1.0)


def gwk_kernel(adj_ref, cat_ref, w0_ref, al0_ref, ar0_ref,
               w1_ref, al1_ref, ar1_ref, w2_ref, al2_ref, ar2_ref,
               wc_ref, bc_ref, out_ref):
    cat = cat_ref[...]                                   # (N, N) counting-attention
    hid = al0_ref.shape[1]
    heads0, heads1 = al0_ref.shape[0], al1_ref.shape[0]

    # node feature = normalized in-degree.  adj[dst, src] => in-degree is a row sum
    # (no transpose / out-degree needed by this model).
    indeg = jnp.sum(adj_ref[...], axis=1, keepdims=True)                  # (N, 1)
    mean = jnp.mean(indeg)
    std = jnp.sqrt(jnp.mean((indeg - mean) ** 2))
    h = (indeg - mean) / jnp.maximum(std, 1e-6)          # eps guard: regular graph => std==0

    al0, ar0 = al0_ref[...], ar0_ref[...]
    al1, ar1 = al1_ref[...], ar1_ref[...]

    # ---- layer 0: in_dim == 1, so the fc of all heads is a VPU broadcast outer product
    ft0 = h * w0_ref[...]                                                 # (N, hid*heads0)
    outs = []
    for j in range(heads0):
        hf = ft0[:, j * hid:(j + 1) * hid]
        outs.append(_gwk_head(hf, al0[j:j + 1, :], ar0[j:j + 1, :], cat))
    h = jnp.concatenate(outs, axis=1)                                     # (N, hid*heads0)

    # ---- layer 1: all heads' fc fused into one dense MXU matmul, then per-head attention
    ft1 = jnp.dot(h, w1_ref[...], preferred_element_type=jnp.float32)     # (N, hid*heads1)
    outs = []
    for j in range(heads1):
        hf = ft1[:, j * hid:(j + 1) * hid]
        outs.append(_gwk_head(hf, al1[j:j + 1, :], ar1[j:j + 1, :], cat))
    h = jnp.concatenate(outs, axis=1)                                     # (N, hid*heads1)

    # ---- layer 2: single head
    ft2 = jnp.dot(h, w2_ref[...], preferred_element_type=jnp.float32)     # (N, hid)
    h = _gwk_head(ft2, al2_ref[...], ar2_ref[...], cat)                   # (N, hid)

    # ---- readout (dgl.mean_nodes, single graph) + classifier (lane-dense padded output)
    hg = jnp.mean(h, axis=0, keepdims=True)                               # (1, hid)
    out_ref[...] = (
        jnp.dot(hg, wc_ref[...], preferred_element_type=jnp.float32) + bc_ref[...]
    )                                                                     # (1, 128)


def gwk_classifier_3hid(adj, cat, w0cat, al0, ar0, w1cat, al1, ar1,
                        w2, al2, ar2, wc, bc):
    """All params f32.  adj,cat: (N,N); w0cat: (1,H*h0); al*/ar*: (heads,H);
    w1cat: (H*h0, H*h1); w2: (H*h1, H); wc: (H,C); bc: (1,C).  Returns (1,C) logits."""
    n_classes = wc.shape[1]
    c_pad = 128  # lane-dense output slab; real logits sliced out in the wrapper
    wc_p = jnp.zeros((wc.shape[0], c_pad), jnp.float32).at[:, :n_classes].set(wc)
    bc_p = jnp.zeros((1, c_pad), jnp.float32).at[:, :n_classes].set(bc)

    vmem = pl.BlockSpec(memory_space=pltpu.MemorySpace.VMEM)
    out = pl.pallas_call(
        gwk_kernel,
        out_shape=jax.ShapeDtypeStruct((1, c_pad), jnp.float32),
        in_specs=[vmem] * 13,
        out_specs=vmem,
    )(adj, cat, w0cat, al0, ar0, w1cat, al1, ar1, w2, al2, ar2, wc_p, bc_p)
    return out[:, :n_classes]


# ----------------------------- pure-JAX reference ---------------------------------
def _ref_head(head_ft, al_col, ar_col, cat):
    hi = jax.lax.Precision.HIGHEST
    a1 = jnp.dot(head_ft, al_col, precision=hi)
    a2 = jnp.dot(head_ft, ar_col, precision=hi)
    a = a1 + jnp.transpose(a2)
    a = jnp.maximum(a, 0.2 * a)
    a_nomi = jnp.exp(a) * cat
    a_deno = jnp.sum(a_nomi, axis=1, keepdims=True)
    a_nor = a_nomi / (a_deno + 1e-9)
    ret = jnp.dot(a_nor, head_ft, precision=hi)
    return jnp.where(ret > 0.0, ret, jnp.exp(jnp.minimum(ret, 0.0)) - 1.0)


def reference_forward(adj, cat, w0cat, al0, ar0, w1cat, al1, ar1, w2, al2, ar2, wc, bc):
    hi = jax.lax.Precision.HIGHEST
    hid = al0.shape[1]
    heads0, heads1 = al0.shape[0], al1.shape[0]
    indeg = jnp.sum(adj, axis=1, keepdims=True)
    mean = jnp.mean(indeg)
    std = jnp.sqrt(jnp.mean((indeg - mean) ** 2))
    h = (indeg - mean) / jnp.maximum(std, 1e-6)

    ft0 = jnp.dot(h, w0cat, precision=hi)
    h = jnp.concatenate(
        [_ref_head(ft0[:, j * hid:(j + 1) * hid], al0[j][:, None], ar0[j][:, None], cat)
         for j in range(heads0)], axis=1)
    ft1 = jnp.dot(h, w1cat, precision=hi)
    h = jnp.concatenate(
        [_ref_head(ft1[:, j * hid:(j + 1) * hid], al1[j][:, None], ar1[j][:, None], cat)
         for j in range(heads1)], axis=1)
    ft2 = jnp.dot(h, w2, precision=hi)
    h = _ref_head(ft2, al2[0][:, None], ar2[0][:, None], cat)
    hg = jnp.mean(h, axis=0, keepdims=True)
    return jnp.dot(hg, wc, precision=hi) + bc


if __name__ == "__main__":
    N, IN_DIM, HID, N_CLASSES = 16, 1, 32, 4
    HEADS = (2, 2)  # num_heads[0], num_heads[1]; third layer always has 1 head

    key = jax.random.PRNGKey(0)
    ks = jax.random.split(key, 13)

    # deterministic random directed graph as dense adjacency adj[dst, src] (no self loops)
    adj = jax.random.bernoulli(ks[0], p=0.3, shape=(N, N)).astype(jnp.float32)
    adj = adj * (1.0 - jnp.eye(N, dtype=jnp.float32))

    # counting-attention matrix (normally produced by the host-side random-walk routine):
    # discounted weights on edges, 1.0 on the diagonal (start node counted once).
    cat = jax.random.uniform(ks[1], (N, N), jnp.float32) * adj + jnp.eye(N, dtype=jnp.float32)

    s = 0.1
    # layer 0: fc weights of both heads concatenated along the output dim (W^T form), in_dim=1
    w0cat = jax.random.normal(ks[2], (IN_DIM, HID * HEADS[0]), jnp.float32) * s
    al0 = jax.random.normal(ks[3], (HEADS[0], HID), jnp.float32) * s
    ar0 = jax.random.normal(ks[4], (HEADS[0], HID), jnp.float32) * s
    # layer 1: fc weights of both heads concatenated (W^T form)
    w1cat = jax.random.normal(ks[5], (HID * HEADS[0], HID * HEADS[1]), jnp.float32) * s
    al1 = jax.random.normal(ks[6], (HEADS[1], HID), jnp.float32) * s
    ar1 = jax.random.normal(ks[7], (HEADS[1], HID), jnp.float32) * s
    # layer 2: single head (W^T form)
    w2 = jax.random.normal(ks[8], (HID * HEADS[1], HID), jnp.float32) * s
    al2 = jax.random.normal(ks[9], (1, HID), jnp.float32) * s
    ar2 = jax.random.normal(ks[10], (1, HID), jnp.float32) * s
    # classifier Linear(hidden, n_classes): weight transposed, bias
    wc = jax.random.normal(ks[11], (HID, N_CLASSES), jnp.float32) * s
    bc = jax.random.normal(ks[12], (1, N_CLASSES), jnp.float32) * s

    out = gwk_classifier_3hid(adj, cat, w0cat, al0, ar0, w1cat, al1, ar1, w2, al2, ar2, wc, bc)
    out = jax.block_until_ready(out)

    ref = reference_forward(adj, cat, w0cat, al0, ar0, w1cat, al1, ar1, w2, al2, ar2, wc, bc)
    assert out.shape == (1, N_CLASSES)
    assert jnp.allclose(out, ref, atol=1e-4, rtol=1e-4), (out, ref)

    print("KERNEL_OK")
</pallas_src>

<mosaic_0001>
module attributes {stable_mosaic.version = 11 : i64} {
  func.func @gwk_kernel(%arg0: memref<16x16xf32, #tpu.memory_space<vmem>>, %arg1: memref<16x16xf32, #tpu.memory_space<vmem>>, %arg2: memref<1x64xf32, #tpu.memory_space<vmem>>, %arg3: memref<2x32xf32, #tpu.memory_space<vmem>>, %arg4: memref<2x32xf32, #tpu.memory_space<vmem>>, %arg5: memref<64x64xf32, #tpu.memory_space<vmem>>, %arg6: memref<2x32xf32, #tpu.memory_space<vmem>>, %arg7: memref<2x32xf32, #tpu.memory_space<vmem>>, %arg8: memref<64x32xf32, #tpu.memory_space<vmem>>, %arg9: memref<1x32xf32, #tpu.memory_space<vmem>>, %arg10: memref<1x32xf32, #tpu.memory_space<vmem>>, %arg11: memref<32x128xf32, #tpu.memory_space<vmem>>, %arg12: memref<1x128xf32, #tpu.memory_space<vmem>>, %arg13: memref<1x128xf32, #tpu.memory_space<vmem>>) attributes {dimension_semantics = [], scalar_prefetch = 0 : i64, scratch_operands = 0 : i64, tpu.core_type = #tpu.core_type<tc>} {
    %c0 = arith.constant 0 : index
    %c0_0 = arith.constant 0 : index
    %0 = vector.load %arg1[%c0, %c0_0] : memref<16x16xf32, #tpu.memory_space<vmem>>, vector<16x16xf32>
    %c0_1 = arith.constant 0 : index
    %c0_2 = arith.constant 0 : index
    %1 = vector.load %arg0[%c0_1, %c0_2] : memref<16x16xf32, #tpu.memory_space<vmem>>, vector<16x16xf32>
    %cst = arith.constant dense<0.000000e+00> : vector<16xf32>
    %2 = vector.multi_reduction <add>, %1, %cst [1] : vector<16x16xf32> to vector<16xf32>
    %3 = vector.shape_cast %2 : vector<16xf32> to vector<16x1xf32>
    %4 = vector.shape_cast %3 : vector<16x1xf32> to vector<1x16x1xf32>
    %cst_3 = arith.constant dense<0.000000e+00> : vector<1xf32>
    %5 = vector.multi_reduction <add>, %4, %cst_3 [1, 2] : vector<1x16x1xf32> to vector<1xf32>
    %6 = vector.shape_cast %5 : vector<1xf32> to vector<1x1x1xf32>
    %7 = vector.extract %6[0, 0, 0] : f32 from vector<1x1x1xf32>
    %cst_4 = arith.constant 1.600000e+01 : f32
    %8 = arith.divf %7, %cst_4 : f32
    %9 = vector.broadcast %8 : f32 to vector<16x1xf32>
    %10 = arith.subf %3, %9 : vector<16x1xf32>
    %11 = arith.mulf %10, %10 : vector<16x1xf32>
    %12 = vector.shape_cast %11 : vector<16x1xf32> to vector<1x16x1xf32>
    %cst_5 = arith.constant dense<0.000000e+00> : vector<1xf32>
    %13 = vector.multi_reduction <add>, %12, %cst_5 [1, 2] : vector<1x16x1xf32> to vector<1xf32>
    %14 = vector.shape_cast %13 : vector<1xf32> to vector<1x1x1xf32>
    %15 = vector.extract %14[0, 0, 0] : f32 from vector<1x1x1xf32>
    %cst_6 = arith.constant 1.600000e+01 : f32
    %16 = arith.divf %15, %cst_6 : f32
    %17 = math.sqrt %16 : f32
    %18 = vector.broadcast %8 : f32 to vector<16x1xf32>
    %19 = arith.subf %3, %18 : vector<16x1xf32>
    %cst_7 = arith.constant 9.99999997E-7 : f32
    %20 = arith.maximumf %17, %cst_7 : f32
    %21 = vector.broadcast %20 : f32 to vector<16x1xf32>
    %22 = arith.divf %19, %21 : vector<16x1xf32>
    %c0_8 = arith.constant 0 : index
    %c0_9 = arith.constant 0 : index
    %23 = vector.load %arg3[%c0_8, %c0_9] : memref<2x32xf32, #tpu.memory_space<vmem>>, vector<2x32xf32>
    %c0_10 = arith.constant 0 : index
    %c0_11 = arith.constant 0 : index
    %24 = vector.load %arg4[%c0_10, %c0_11] : memref<2x32xf32, #tpu.memory_space<vmem>>, vector<2x32xf32>
    %c0_12 = arith.constant 0 : index
    %c0_13 = arith.constant 0 : index
    %25 = vector.load %arg6[%c0_12, %c0_13] : memref<2x32xf32, #tpu.memory_space<vmem>>, vector<2x32xf32>
    %c0_14 = arith.constant 0 : index
    %c0_15 = arith.constant 0 : index
    %26 = vector.load %arg7[%c0_14, %c0_15] : memref<2x32xf32, #tpu.memory_space<vmem>>, vector<2x32xf32>
    %c0_16 = arith.constant 0 : index
    %c0_17 = arith.constant 0 : index
    %27 = vector.load %arg2[%c0_16, %c0_17] : memref<1x64xf32, #tpu.memory_space<vmem>>, vector<1x64xf32>
    %28 = vector.broadcast %22 : vector<16x1xf32> to vector<16x64xf32>
    %29 = vector.broadcast %27 : vector<1x64xf32> to vector<16x64xf32>
    %30 = arith.mulf %28, %29 : vector<16x64xf32>
    %31 = vector.extract_strided_slice %30 {offsets = [0, 0], sizes = [16, 32], strides = [1, 1]} : vector<16x64xf32> to vector<16x32xf32>
    %32 = vector.extract_strided_slice %23 {offsets = [0, 0], sizes = [1, 32], strides = [1, 1]} : vector<2x32xf32> to vector<1x32xf32>
    %33 = vector.extract_strided_slice %24 {offsets = [0, 0], sizes = [1, 32], strides = [1, 1]} : vector<2x32xf32> to vector<1x32xf32>
    %34 = vector.broadcast %32 : vector<1x32xf32> to vector<16x32xf32>
    %35 = arith.mulf %31, %34 : vector<16x32xf32>
    %cst_18 = arith.constant dense<0.000000e+00> : vector<16xf32>
    %36 = vector.multi_reduction <add>, %35, %cst_18 [1] : vector<16x32xf32> to vector<16xf32>
    %37 = vector.shape_cast %36 : vector<16xf32> to vector<16x1xf32>
    %cst_19 = arith.constant dense<0.000000e+00> : vector<1x16xf32>
    %38 = tpu.matmul %33, %31, %cst_19 {dimension_numbers = #tpu.dot_dimension_numbers<[1], [1], [0], [0], [0, 0, 1, 0], [], []>} : vector<1x32xf32>, vector<16x32xf32>, vector<1x16xf32> -> vector<1x16xf32>
    %39 = vector.broadcast %37 : vector<16x1xf32> to vector<16x16xf32>
    %40 = vector.broadcast %38 : vector<1x16xf32> to vector<16x16xf32>
    %41 = arith.addf %39, %40 : vector<16x16xf32>
    %cst_20 = arith.constant 2.000000e-01 : f32
    %42 = vector.broadcast %cst_20 : f32 to vector<16x16xf32>
    %43 = arith.mulf %42, %41 : vector<16x16xf32>
    %44 = arith.maximumf %41, %43 : vector<16x16xf32>
    %45 = math.exp %44 : vector<16x16xf32>
    %46 = arith.mulf %45, %0 : vector<16x16xf32>
    %cst_21 = arith.constant dense<0.000000e+00> : vector<16xf32>
    %47 = vector.multi_reduction <add>, %46, %cst_21 [1] : vector<16x16xf32> to vector<16xf32>
    %48 = vector.shape_cast %47 : vector<16xf32> to vector<16x1xf32>
    %cst_22 = arith.constant 9.99999971E-10 : f32
    %49 = vector.broadcast %cst_22 : f32 to vector<16x1xf32>
    %50 = arith.addf %48, %49 : vector<16x1xf32>
    %51 = vector.broadcast %50 : vector<16x1xf32> to vector<16x16xf32>
    %52 = arith.divf %46, %51 : vector<16x16xf32>
    %cst_23 = arith.constant dense<0.000000e+00> : vector<16x32xf32>
    %53 = tpu.matmul %52, %31, %cst_23 {dimension_numbers = #tpu.dot_dimension_numbers<[1], [0], [0], [1], [0, 0, 1, 1], [], []>} : vector<16x16xf32>, vector<16x32xf32>, vector<16x32xf32> -> vector<16x32xf32>
    %cst_24 = arith.constant 0.000000e+00 : f32
    %54 = vector.broadcast %cst_24 : f32 to vector<16x32xf32>
    %55 = arith.cmpf ogt, %53, %54 : vector<16x32xf32>
    %cst_25 = arith.constant 0.000000e+00 : f32
    %56 = vector.broadcast %cst_25 : f32 to vector<16x32xf32>
    %57 = arith.minimumf %53, %56 : vector<16x32xf32>
    %58 = math.exp %57 : vector<16x32xf32>
    %cst_26 = arith.constant 1.000000e+00 : f32
    %59 = vector.broadcast %cst_26 : f32 to vector<16x32xf32>
    %60 = arith.subf %58, %59 : vector<16x32xf32>
    %61 = arith.select %55, %53, %60 : vector<16x32xi1>, vector<16x32xf32>
    %62 = vector.extract_strided_slice %30 {offsets = [0, 32], sizes = [16, 32], strides = [1, 1]} : vector<16x64xf32> to vector<16x32xf32>
    %63 = vector.extract_strided_slice %23 {offsets = [1, 0], sizes = [1, 32], strides = [1, 1]} : vector<2x32xf32> to vector<1x32xf32>
    %64 = vector.extract_strided_slice %24 {offsets = [1, 0], sizes = [1, 32], strides = [1, 1]} : vector<2x32xf32> to vector<1x32xf32>
    %65 = vector.broadcast %63 : vector<1x32xf32> to vector<16x32xf32>
    %66 = arith.mulf %62, %65 : vector<16x32xf32>
    %cst_27 = arith.constant dense<0.000000e+00> : vector<16xf32>
    %67 = vector.multi_reduction <add>, %66, %cst_27 [1] : vector<16x32xf32> to vector<16xf32>
    %68 = vector.shape_cast %67 : vector<16xf32> to vector<16x1xf32>
    %cst_28 = arith.constant dense<0.000000e+00> : vector<1x16xf32>
    %69 = tpu.matmul %64, %62, %cst_28 {dimension_numbers = #tpu.dot_dimension_numbers<[1], [1], [0], [0], [0, 0, 1, 0], [], []>} : vector<1x32xf32>, vector<16x32xf32>, vector<1x16xf32> -> vector<1x16xf32>
    %70 = vector.broadcast %68 : vector<16x1xf32> to vector<16x16xf32>
    %71 = vector.broadcast %69 : vector<1x16xf32> to vector<16x16xf32>
    %72 = arith.addf %70, %71 : vector<16x16xf32>
    %cst_29 = arith.constant 2.000000e-01 : f32
    %73 = vector.broadcast %cst_29 : f32 to vector<16x16xf32>
    %74 = arith.mulf %73, %72 : vector<16x16xf32>
    %75 = arith.maximumf %72, %74 : vector<16x16xf32>
    %76 = math.exp %75 : vector<16x16xf32>
    %77 = arith.mulf %76, %0 : vector<16x16xf32>
    %cst_30 = arith.constant dense<0.000000e+00> : vector<16xf32>
    %78 = vector.multi_reduction <add>, %77, %cst_30 [1] : vector<16x16xf32> to vector<16xf32>
    %79 = vector.shape_cast %78 : vector<16xf32> to vector<16x1xf32>
    %cst_31 = arith.constant 9.99999971E-10 : f32
    %80 = vector.broadcast %cst_31 : f32 to vector<16x1xf32>
    %81 = arith.addf %79, %80 : vector<16x1xf32>
    %82 = vector.broadcast %81 : vector<16x1xf32> to vector<16x16xf32>
    %83 = arith.divf %77, %82 : vector<16x16xf32>
    %cst_32 = arith.constant dense<0.000000e+00> : vector<16x32xf32>
    %84 = tpu.matmul %83, %62, %cst_32 {dimension_numbers = #tpu.dot_dimension_numbers<[1], [0], [0], [1], [0, 0, 1, 1], [], []>} : vector<16x16xf32>, vector<16x32xf32>, vector<16x32xf32> -> vector<16x32xf32>
    %cst_33 = arith.constant 0.000000e+00 : f32
    %85 = vector.broadcast %cst_33 : f32 to vector<16x32xf32>
    %86 = arith.cmpf ogt, %84, %85 : vector<16x32xf32>
    %cst_34 = arith.constant 0.000000e+00 : f32
    %87 = vector.broadcast %cst_34 : f32 to vector<16x32xf32>
    %88 = arith.minimumf %84, %87 : vector<16x32xf32>
    %89 = math.exp %88 : vector<16x32xf32>
    %cst_35 = arith.constant 1.000000e+00 : f32
    %90 = vector.broadcast %cst_35 : f32 to vector<16x32xf32>
    %91 = arith.subf %89, %90 : vector<16x32xf32>
    %92 = arith.select %86, %84, %91 : vector<16x32xi1>, vector<16x32xf32>
    %93 = tpu.concatenate %61, %92 in 1 : vector<16x32xf32>, vector<16x32xf32> -> vector<16x64xf32>
    %c0_36 = arith.constant 0 : index
    %c0_37 = arith.constant 0 : index
    %94 = vector.load %arg5[%c0_36, %c0_37] : memref<64x64xf32, #tpu.memory_space<vmem>>, vector<64x64xf32>
    %cst_38 = arith.constant dense<0.000000e+00> : vector<16x64xf32>
    %95 = tpu.matmul %93, %94, %cst_38 {dimension_numbers = #tpu.dot_dimension_numbers<[1], [0], [0], [1], [0, 0, 1, 1], [], []>} : vector<16x64xf32>, vector<64x64xf32>, vector<16x64xf32> -> vector<16x64xf32>
    %96 = vector.extract_strided_slice %95 {offsets = [0, 0], sizes = [16, 32], strides = [1, 1]} : vector<16x64xf32> to vector<16x32xf32>
    %97 = vector.extract_strided_slice %25 {offsets = [0, 0], sizes = [1, 32], strides = [1, 1]} : vector<2x32xf32> to vector<1x32xf32>
    %98 = vector.extract_strided_slice %26 {offsets = [0, 0], sizes = [1, 32], strides = [1, 1]} : vector<2x32xf32> to vector<1x32xf32>
    %99 = vector.broadcast %97 : vector<1x32xf32> to vector<16x32xf32>
    %100 = arith.mulf %96, %99 : vector<16x32xf32>
    %cst_39 = arith.constant dense<0.000000e+00> : vector<16xf32>
    %101 = vector.multi_reduction <add>, %100, %cst_39 [1] : vector<16x32xf32> to vector<16xf32>
    %102 = vector.shape_cast %101 : vector<16xf32> to vector<16x1xf32>
    %cst_40 = arith.constant dense<0.000000e+00> : vector<1x16xf32>
    %103 = tpu.matmul %98, %96, %cst_40 {dimension_numbers = #tpu.dot_dimension_numbers<[1], [1], [0], [0], [0, 0, 1, 0], [], []>} : vector<1x32xf32>, vector<16x32xf32>, vector<1x16xf32> -> vector<1x16xf32>
    %104 = vector.broadcast %102 : vector<16x1xf32> to vector<16x16xf32>
    %105 = vector.broadcast %103 : vector<1x16xf32> to vector<16x16xf32>
    %106 = arith.addf %104, %105 : vector<16x16xf32>
    %cst_41 = arith.constant 2.000000e-01 : f32
    %107 = vector.broadcast %cst_41 : f32 to vector<16x16xf32>
    %108 = arith.mulf %107, %106 : vector<16x16xf32>
    %109 = arith.maximumf %106, %108 : vector<16x16xf32>
    %110 = math.exp %109 : vector<16x16xf32>
    %111 = arith.mulf %110, %0 : vector<16x16xf32>
    %cst_42 = arith.constant dense<0.000000e+00> : vector<16xf32>
    %112 = vector.multi_reduction <add>, %111, %cst_42 [1] : vector<16x16xf32> to vector<16xf32>
    %113 = vector.shape_cast %112 : vector<16xf32> to vector<16x1xf32>
    %cst_43 = arith.constant 9.99999971E-10 : f32
    %114 = vector.broadcast %cst_43 : f32 to vector<16x1xf32>
    %115 = arith.addf %113, %114 : vector<16x1xf32>
    %116 = vector.broadcast %115 : vector<16x1xf32> to vector<16x16xf32>
    %117 = arith.divf %111, %116 : vector<16x16xf32>
    %cst_44 = arith.constant dense<0.000000e+00> : vector<16x32xf32>
    %118 = tpu.matmul %117, %96, %cst_44 {dimension_numbers = #tpu.dot_dimension_numbers<[1], [0], [0], [1], [0, 0, 1, 1], [], []>} : vector<16x16xf32>, vector<16x32xf32>, vector<16x32xf32> -> vector<16x32xf32>
    %cst_45 = arith.constant 0.000000e+00 : f32
    %119 = vector.broadcast %cst_45 : f32 to vector<16x32xf32>
    %120 = arith.cmpf ogt, %118, %119 : vector<16x32xf32>
    %cst_46 = arith.constant 0.000000e+00 : f32
    %121 = vector.broadcast %cst_46 : f32 to vector<16x32xf32>
    %122 = arith.minimumf %118, %121 : vector<16x32xf32>
    %123 = math.exp %122 : vector<16x32xf32>
    %cst_47 = arith.constant 1.000000e+00 : f32
    %124 = vector.broadcast %cst_47 : f32 to vector<16x32xf32>
    %125 = arith.subf %123, %124 : vector<16x32xf32>
    %126 = arith.select %120, %118, %125 : vector<16x32xi1>, vector<16x32xf32>
    %127 = vector.extract_strided_slice %95 {offsets = [0, 32], sizes = [16, 32], strides = [1, 1]} : vector<16x64xf32> to vector<16x32xf32>
    %128 = vector.extract_strided_slice %25 {offsets = [1, 0], sizes = [1, 32], strides = [1, 1]} : vector<2x32xf32> to vector<1x32xf32>
    %129 = vector.extract_strided_slice %26 {offsets = [1, 0], sizes = [1, 32], strides = [1, 1]} : vector<2x32xf32> to vector<1x32xf32>
    %130 = vector.broadcast %128 : vector<1x32xf32> to vector<16x32xf32>
    %131 = arith.mulf %127, %130 : vector<16x32xf32>
    %cst_48 = arith.constant dense<0.000000e+00> : vector<16xf32>
    %132 = vector.multi_reduction <add>, %131, %cst_48 [1] : vector<16x32xf32> to vector<16xf32>
    %133 = vector.shape_cast %132 : vector<16xf32> to vector<16x1xf32>
    %cst_49 = arith.constant dense<0.000000e+00> : vector<1x16xf32>
    %134 = tpu.matmul %129, %127, %cst_49 {dimension_numbers = #tpu.dot_dimension_numbers<[1], [1], [0], [0], [0, 0, 1, 0], [], []>} : vector<1x32xf32>, vector<16x32xf32>, vector<1x16xf32> -> vector<1x16xf32>
    %135 = vector.broadcast %133 : vector<16x1xf32> to vector<16x16xf32>
    %136 = vector.broadcast %134 : vector<1x16xf32> to vector<16x16xf32>
    %137 = arith.addf %135, %136 : vector<16x16xf32>
    %cst_50 = arith.constant 2.000000e-01 : f32
    %138 = vector.broadcast %cst_50 : f32 to vector<16x16xf32>
    %139 = arith.mulf %138, %137 : vector<16x16xf32>
    %140 = arith.maximumf %137, %139 : vector<16x16xf32>
    %141 = math.exp %140 : vector<16x16xf32>
    %142 = arith.mulf %141, %0 : vector<16x16xf32>
    %cst_51 = arith.constant dense<0.000000e+00> : vector<16xf32>
    %143 = vector.multi_reduction <add>, %142, %cst_51 [1] : vector<16x16xf32> to vector<16xf32>
    %144 = vector.shape_cast %143 : vector<16xf32> to vector<16x1xf32>
    %cst_52 = arith.constant 9.99999971E-10 : f32
    %145 = vector.broadcast %cst_52 : f32 to vector<16x1xf32>
    %146 = arith.addf %144, %145 : vector<16x1xf32>
    %147 = vector.broadcast %146 : vector<16x1xf32> to vector<16x16xf32>
    %148 = arith.divf %142, %147 : vector<16x16xf32>
    %cst_53 = arith.constant dense<0.000000e+00> : vector<16x32xf32>
    %149 = tpu.matmul %148, %127, %cst_53 {dimension_numbers = #tpu.dot_dimension_numbers<[1], [0], [0], [1], [0, 0, 1, 1], [], []>} : vector<16x16xf32>, vector<16x32xf32>, vector<16x32xf32> -> vector<16x32xf32>
    %cst_54 = arith.constant 0.000000e+00 : f32
    %150 = vector.broadcast %cst_54 : f32 to vector<16x32xf32>
    %151 = arith.cmpf ogt, %149, %150 : vector<16x32xf32>
    %cst_55 = arith.constant 0.000000e+00 : f32
    %152 = vector.broadcast %cst_55 : f32 to vector<16x32xf32>
    %153 = arith.minimumf %149, %152 : vector<16x32xf32>
    %154 = math.exp %153 : vector<16x32xf32>
    %cst_56 = arith.constant 1.000000e+00 : f32
    %155 = vector.broadcast %cst_56 : f32 to vector<16x32xf32>
    %156 = arith.subf %154, %155 : vector<16x32xf32>
    %157 = arith.select %151, %149, %156 : vector<16x32xi1>, vector<16x32xf32>
    %158 = tpu.concatenate %126, %157 in 1 : vector<16x32xf32>, vector<16x32xf32> -> vector<16x64xf32>
    %c0_57 = arith.constant 0 : index
    %c0_58 = arith.constant 0 : index
    %159 = vector.load %arg8[%c0_57, %c0_58] : memref<64x32xf32, #tpu.memory_space<vmem>>, vector<64x32xf32>
    %cst_59 = arith.constant dense<0.000000e+00> : vector<16x32xf32>
    %160 = tpu.matmul %158, %159, %cst_59 {dimension_numbers = #tpu.dot_dimension_numbers<[1], [0], [0], [1], [0, 0, 1, 1], [], []>} : vector<16x64xf32>, vector<64x32xf32>, vector<16x32xf32> -> vector<16x32xf32>
    %c0_60 = arith.constant 0 : index
    %c0_61 = arith.constant 0 : index
    %161 = vector.load %arg9[%c0_60, %c0_61] : memref<1x32xf32, #tpu.memory_space<vmem>>, vector<1x32xf32>
    %c0_62 = arith.constant 0 : index
    %c0_63 = arith.constant 0 : index
    %162 = vector.load %arg10[%c0_62, %c0_63] : memref<1x32xf32, #tpu.memory_space<vmem>>, vector<1x32xf32>
    %163 = vector.broadcast %161 : vector<1x32xf32> to vector<16x32xf32>
    %164 = arith.mulf %160, %163 : vector<16x32xf32>
    %cst_64 = arith.constant dense<0.000000e+00> : vector<16xf32>
    %165 = vector.multi_reduction <add>, %164, %cst_64 [1] : vector<16x32xf32> to vector<16xf32>
    %166 = vector.shape_cast %165 : vector<16xf32> to vector<16x1xf32>
    %cst_65 = arith.constant dense<0.000000e+00> : vector<1x16xf32>
    %167 = tpu.matmul %162, %160, %cst_65 {dimension_numbers = #tpu.dot_dimension_numbers<[1], [1], [0], [0], [0, 0, 1, 0], [], []>} : vector<1x32xf32>, vector<16x32xf32>, vector<1x16xf32> -> vector<1x16xf32>
    %168 = vector.broadcast %166 : vector<16x1xf32> to vector<16x16xf32>
    %169 = vector.broadcast %167 : vector<1x16xf32> to vector<16x16xf32>
    %170 = arith.addf %168, %169 : vector<16x16xf32>
    %cst_66 = arith.constant 2.000000e-01 : f32
    %171 = vector.broadcast %cst_66 : f32 to vector<16x16xf32>
    %172 = arith.mulf %171, %170 : vector<16x16xf32>
    %173 = arith.maximumf %170, %172 : vector<16x16xf32>
    %174 = math.exp %173 : vector<16x16xf32>
    %175 = arith.mulf %174, %0 : vector<16x16xf32>
    %cst_67 = arith.constant dense<0.000000e+00> : vector<16xf32>
    %176 = vector.multi_reduction <add>, %175, %cst_67 [1] : vector<16x16xf32> to vector<16xf32>
    %177 = vector.shape_cast %176 : vector<16xf32> to vector<16x1xf32>
    %cst_68 = arith.constant 9.99999971E-10 : f32
    %178 = vector.broadcast %cst_68 : f32 to vector<16x1xf32>
    %179 = arith.addf %177, %178 : vector<16x1xf32>
    %180 = vector.broadcast %179 : vector<16x1xf32> to vector<16x16xf32>
    %181 = arith.divf %175, %180 : vector<16x16xf32>
    %cst_69 = arith.constant dense<0.000000e+00> : vector<16x32xf32>
    %182 = tpu.matmul %181, %160, %cst_69 {dimension_numbers = #tpu.dot_dimension_numbers<[1], [0], [0], [1], [0, 0, 1, 1], [], []>} : vector<16x16xf32>, vector<16x32xf32>, vector<16x32xf32> -> vector<16x32xf32>
    %cst_70 = arith.constant 0.000000e+00 : f32
    %183 = vector.broadcast %cst_70 : f32 to vector<16x32xf32>
    %184 = arith.cmpf ogt, %182, %183 : vector<16x32xf32>
    %cst_71 = arith.constant 0.000000e+00 : f32
    %185 = vector.broadcast %cst_71 : f32 to vector<16x32xf32>
    %186 = arith.minimumf %182, %185 : vector<16x32xf32>
    %187 = math.exp %186 : vector<16x32xf32>
    %cst_72 = arith.constant 1.000000e+00 : f32
    %188 = vector.broadcast %cst_72 : f32 to vector<16x32xf32>
    %189 = arith.subf %187, %188 : vector<16x32xf32>
    %190 = arith.select %184, %182, %189 : vector<16x32xi1>, vector<16x32xf32>
    %cst_73 = arith.constant dense<0.000000e+00> : vector<32xf32>
    %191 = vector.multi_reduction <add>, %190, %cst_73 [0] : vector<16x32xf32> to vector<32xf32>
    %192 = vector.shape_cast %191 : vector<32xf32> to vector<1x32xf32>
    %cst_74 = arith.constant 1.600000e+01 : f32
    %193 = vector.broadcast %cst_74 : f32 to vector<1x32xf32>
    %194 = arith.divf %192, %193 : vector<1x32xf32>
    %c0_75 = arith.constant 0 : index
    %c0_76 = arith.constant 0 : index
    %195 = vector.load %arg11[%c0_75, %c0_76] : memref<32x128xf32, #tpu.memory_space<vmem>>, vector<32x128xf32>
    %cst_77 = arith.constant dense<0.000000e+00> : vector<1x128xf32>
    %196 = tpu.matmul %194, %195, %cst_77 {dimension_numbers = #tpu.dot_dimension_numbers<[1], [0], [0], [1], [0, 0, 1, 1], [], []>} : vector<1x32xf32>, vector<32x128xf32>, vector<1x128xf32> -> vector<1x128xf32>
    %c0_78 = arith.constant 0 : index
    %c0_79 = arith.constant 0 : index
    %197 = vector.load %arg12[%c0_78, %c0_79] : memref<1x128xf32, #tpu.memory_space<vmem>>, vector<1x128xf32>
    %198 = arith.addf %196, %197 : vector<1x128xf32>
    %c0_80 = arith.constant 0 : index
    %c0_81 = arith.constant 0 : index
    %199 = vector.load %arg13[%c0_80, %c0_81] : memref<1x128xf32, #tpu.memory_space<vmem>>, vector<1x128xf32>
    tpu.vector_store %arg13[%c0_80, %c0_81], %198 {strides = array<i32>} : memref<1x128xf32, #tpu.memory_space<vmem>>, vector<1x128xf32>,
    return
  }
}

</mosaic_0001>

<llo_original>
// kernel: tpu_custom_call.1
$region0: #{tpu_custom_call.1}
  #allocation0 [shape = 'u32[]', space=smem, size = 0x4, offset = 0x4, fixed_abs, tag = 'smem constant byte address 0x4 - core index']
  #allocation1 [shape = 'u32[144,128]{1,0:T(1,128)}', space=vmem, size = 0x12000, scoped, tag = 'internal scratch']
  %s0 = inlined_call_operand.hbm [shape: f32[16,16], index: 0, kind: input, shape index: {}]
  %s1 = inlined_call_operand.hbm [shape: f32[16,16], index: 1, kind: input, shape index: {}]
  %s2 = inlined_call_operand.vmem [shape: f32[1,64], index: 2, kind: input, shape index: {}]
  %s3 = inlined_call_operand.vmem [shape: f32[2,32], index: 3, kind: input, shape index: {}]
  %s4 = inlined_call_operand.vmem [shape: f32[2,32], index: 4, kind: input, shape index: {}]
  %s5 = inlined_call_operand.vmem [shape: f32[64,64], index: 5, kind: input, shape index: {}]
  %s6 = inlined_call_operand.vmem [shape: f32[2,32], index: 6, kind: input, shape index: {}]
  %s7 = inlined_call_operand.vmem [shape: f32[2,32], index: 7, kind: input, shape index: {}]
  %s8 = inlined_call_operand.vmem [shape: f32[64,32], index: 8, kind: input, shape index: {}]
  %s9 = inlined_call_operand.vmem [shape: f32[1,32], index: 9, kind: input, shape index: {}]
  %s10 = inlined_call_operand.vmem [shape: f32[1,32], index: 10, kind: input, shape index: {}]
  %s11 = inlined_call_operand.vmem [shape: f32[32,128], index: 11, kind: input, shape index: {}]
  %s12 = inlined_call_operand.vmem [shape: f32[1,128], index: 12, kind: input, shape index: {}]
  %s13 = inlined_call_operand.hbm [shape: f32[1,128], index: 13, kind: output, shape index: {}]
  %s14 = sld [smem:[#allocation0]]
  $region70: #{tpu_custom_call.1} parent=0
    _
  %s16 = ssub.s32 1, %s14
  %s17 = scalar_select 0, %s16, %s14
  $region1: #{tpu_custom_call.1} parent=0
    #allocation2 [shape = 'u8[8192]{0}', space=vmem, size = 0x2000, scoped, tag = 'input window, operand 0, single buffered']
    #allocation3 [shape = 's32[1]{0}', space=sflag, size = 0x4, scoped, tag = 'scoped memory for tpu_custom_call.1']
    #allocation4 [shape = 's32[1]{0}', space=sflag, size = 0x4, scoped, tag = 'scoped memory for tpu_custom_call.1']
    #allocation5 [shape = 'u8[8192]{0}', space=vmem, size = 0x2000, scoped, tag = 'input window, operand 1, single buffered']
    #allocation6 [shape = 's32[1]{0}', space=sflag, size = 0x4, scoped, tag = 'scoped memory for tpu_custom_call.1']
    #allocation7 [shape = 'u8[512]{0}', space=vmem, size = 0x400, scoped, tag = 'output window, operand 0, single buffered']
    %18 = vsyncpa [#allocation3], 0
    %19 = vsyncpa [#allocation6], 0
    %20 = vsyncpa [#allocation4], 0
    // Predicated region
    $region2: #{tpu_custom_call.1} parent=1 // pred_check
      _
    $region3: #{tpu_custom_call.1} parent=1 // pred_check_branch
      %22 = sbr.rel (0) target = $region5
    $region4: #{tpu_custom_call.1} parent=1 // pred_region
      %s24 = ssub.s32 256, 256
      %25 = vsyncadd [#allocation3], %s24
      %s26 = sshll.u32 [#allocation2], 4
      %s27 = int_to_ptr.vmem [resolvable:$true] %s26
      %32 = dma.hbm_to_vmem [thread:$0]  %s0, 256, %s27, [#allocation3], 128, 128, 8
    $region5: #{tpu_custom_call.1} parent=1 // pred_fallthru
      _
    // Predicated region
    $region6: #{tpu_custom_call.1} parent=1 // pred_check
      _
    $region7: #{tpu_custom_call.1} parent=1 // pred_check_branch
      %34 = sbr.rel (0) target = $region9
    $region8: #{tpu_custom_call.1} parent=1 // pred_region
      %s36 = ssub.s32 256, 256
      %37 = vsyncadd [#allocation6], %s36
      %s38 = sshll.u32 [#allocation5], 4
      %s39 = int_to_ptr.vmem [resolvable:$true] %s38
      %44 = dma.hbm_to_vmem [thread:$0]  %s1, 256, %s39, [#allocation6], 128, 128, 8
    $region9: #{tpu_custom_call.1} parent=1 // pred_fallthru
      _
    // Predicated region
    $region10: #{tpu_custom_call.1} parent=1 // pred_check
      _
    $region11: #{tpu_custom_call.1} parent=1 // pred_check_branch
      %46 = sbr.rel (0) target = $region13
    $region12: #{tpu_custom_call.1} parent=1 // pred_region
      _
    $region13: #{tpu_custom_call.1} parent=1 // pred_fallthru
      _
    // Predicated region
    $region14: #{tpu_custom_call.1} parent=1 // pred_check
      _
    $region15: #{tpu_custom_call.1} parent=1 // pred_check_branch
      %48 = sbr.rel (0) target = $region17
    $region16: #{tpu_custom_call.1} parent=1 // pred_region
      _
    $region17: #{tpu_custom_call.1} parent=1 // pred_fallthru
      _
    // Predicated region
    $region18: #{tpu_custom_call.1} parent=1 // pred_check
      _
    $region19: #{tpu_custom_call.1} parent=1 // pred_check_branch
      %50 = sbr.rel (0) target = $region21
    $region20: #{tpu_custom_call.1} parent=1 // pred_region
      _
    $region21: #{tpu_custom_call.1} parent=1 // pred_fallthru
      _
    // Predicated region
    $region22: #{tpu_custom_call.1} parent=1 // pred_check
      _
    $region23: #{tpu_custom_call.1} parent=1 // pred_check_branch
      %52 = sbr.rel (0) target = $region25
    $region24: #{tpu_custom_call.1} parent=1 // pred_region
      _
    $region25: #{tpu_custom_call.1} parent=1 // pred_fallthru
      _
    // Predicated region
    $region26: #{tpu_custom_call.1} parent=1 // pred_check
      _
    $region27: #{tpu_custom_call.1} parent=1 // pred_check_branch
      %54 = sbr.rel (0) target = $region29
    $region28: #{tpu_custom_call.1} parent=1 // pred_region
      _
    $region29: #{tpu_custom_call.1} parent=1 // pred_fallthru
      _
    // Predicated region
    $region30: #{tpu_custom_call.1} parent=1 // pred_check
      _
    $region31: #{tpu_custom_call.1} parent=1 // pred_check_branch
      %56 = sbr.rel (0) target = $region33
    $region32: #{tpu_custom_call.1} parent=1 // pred_region
      _
    $region33: #{tpu_custom_call.1} parent=1 // pred_fallthru
      _
    // Predicated region
    $region34: #{tpu_custom_call.1} parent=1 // pred_check
      _
    $region35: #{tpu_custom_call.1} parent=1 // pred_check_branch
      %58 = sbr.rel (0) target = $region37
    $region36: #{tpu_custom_call.1} parent=1 // pred_region
      _
    $region37: #{tpu_custom_call.1} parent=1 // pred_fallthru
      _
    // Predicated region
    $region38: #{tpu_custom_call.1} parent=1 // pred_check
      _
    $region39: #{tpu_custom_call.1} parent=1 // pred_check_branch
      %60 = sbr.rel (0) target = $region41
    $region40: #{tpu_custom_call.1} parent=1 // pred_region
      _
    $region41: #{tpu_custom_call.1} parent=1 // pred_fallthru
      _
    // Predicated region
    $region42: #{tpu_custom_call.1} parent=1 // pred_check
      _
    $region43: #{tpu_custom_call.1} parent=1 // pred_check_branch
      %62 = sbr.rel (0) target = $region45
    $region44: #{tpu_custom_call.1} parent=1 // pred_region
      _
    $region45: #{tpu_custom_call.1} parent=1 // pred_fallthru
      _
    // Predicated region
    $region46: #{tpu_custom_call.1} parent=1 // pred_check
      _
    $region47: #{tpu_custom_call.1} parent=1 // pred_check_branch
      %64 = sbr.rel (0) target = $region49
    $region48: #{tpu_custom_call.1} parent=1 // pred_region
      _
    $region49: #{tpu_custom_call.1} parent=1 // pred_fallthru
      _
    // Predicated region
    $region50: #{tpu_custom_call.1} parent=1 // pred_check
      _
    $region51: #{tpu_custom_call.1} parent=1 // pred_check_branch
      %66 = sbr.rel (0) target = $region53
    $region52: #{tpu_custom_call.1} parent=1 // pred_region
      _
    $region53: #{tpu_custom_call.1} parent=1 // pred_fallthru
      _
    // Predicated region
    $region54: #{tpu_custom_call.1} parent=1 // pred_check
      _
    $region55: #{tpu_custom_call.1} parent=1 // pred_check_branch
      %68 = sbr.rel (0) target = $region57
    $region56: #{tpu_custom_call.1} parent=1 // pred_region
      %69 = dma.done [#allocation3], 256
    $region57: #{tpu_custom_call.1} parent=1 // pred_fallthru
      _
    // Predicated region
    $region58: #{tpu_custom_call.1} parent=1 // pred_check
      _
    $region59: #{tpu_custom_call.1} parent=1 // pred_check_branch
      %71 = sbr.rel (0) target = $region61
    $region60: #{tpu_custom_call.1} parent=1 // pred_region
      %72 = dma.done [#allocation6], 256
    $region61: #{tpu_custom_call.1} parent=1 // pred_fallthru
      _
    %v73 = vld [vmem:[#allocation5] sm:$0xff]
    %v74 = vld [vmem:[#allocation5 + $0x8] sm:$0xff]
    %v75 = vld [vmem:[#allocation2] sm:$0xff]
    %v76 = vld [vmem:[#allocation2 + $0x8] sm:$0xff]
    %vm77 = vcmask 130048
    %v78 = vsel %vm77, %v75, 0.0
    %79 = vadd.xlane.f32.xlu0 %v78
    %v80 = vpop.xlane.xlu0 %79
    %v81 = vsel %vm77, %v76, 0.0
    %82 = vadd.xlane.f32.xlu0 %v81
    %v83 = vpop.xlane.xlu0 %82
    %vm84 = vcmask 7168
    %v85 = vsel %vm84, %v80, 0.0
    %v86 = vsel %vm84, %v83, 0.0
    %v87 = vadd.f32 %v85, %v86
    %88 = vadd.xlane.f32.xlu0 %v87
    %v89 = vpop.xlane.xlu0 %88
    %v90 = vrot.slane %v89, 4
    %v91 = vadd.f32 %v89, %v90
    %v92 = vrot.slane %v91, 2
    %v93 = vadd.f32 %v91, %v92
    %v94 = vrot.slane %v93, 1
    %v95 = vadd.f32 %v93, %v94
    %s96 = vtos %v95
    %v97 = vrcp.pop 16.0
    %s98 = vtos %v97
    %s99 = smul.f32 %s96, %s98
    %v100 = vstv %s99
    %v101 = vsub.f32 %v80, %v100
    %v102 = vsub.f32 %v83, %v100
    %v103 = vmul.f32 %v101, %v101
    %v104 = vmul.f32 %v102, %v102
    %v105 = vsel %vm84, %v103, 0.0
    %v106 = vsel %vm84, %v104, 0.0
    %v107 = vadd.f32 %v105, %v106
    %108 = vadd.xlane.f32.xlu0 %v107
    %v109 = vpop.xlane.xlu0 %108
    %v110 = vrot.slane %v109, 4
    %v111 = vadd.f32 %v109, %v110
    %v112 = vrot.slane %v111, 2
    %v113 = vadd.f32 %v111, %v112
    %v114 = vrot.slane %v113, 1
    %v115 = vadd.f32 %v113, %v114
    %s116 = vtos %v115
    %v117 = vrcp.pop 16.0
    %s118 = vtos %v117
    %s119 = smul.f32 %s116, %s118
    %v120 = vstv %s119
    %v121 = vrsqrt.pop %v120
    %v122 = vmul.f32 %v120, %v121
    %vm123 = vcmp.eq.f32.partialorder %v120, inf
    %v124 = vsel %vm123, %v120, %v122
    %vm125 = vcmp.eq.f32.partialorder %v120, 0.0
    %v126 = vand.u32 %v120, 2147483648
    %v127 = vsel %vm125, %v126, %v124
    %s128 = vtos %v127
    %s129 = smax.f32 %s128, 1e-06
    %v130 = vstv %s129
    %v131 = vrcp.pop %v130
    %v132 = vmul.f32 %v101, %v131
    %v133 = vmul.f32 %v102, %v131
    %v134 = vld [vmem:[%s3] sm:$0x3]
    %v135 = vld [vmem:[%s4] sm:$0x3]
    %v136 = vld [vmem:[%s6] sm:$0x3]
    %v137 = vld [vmem:[%s7] sm:$0x3]
    %v138 = vld [vmem:[%s2] sm:$0x1]
    %v140 = vlaneseq
    %v141 = vshrl.u32 %v140, 7
    %v142 = vsub.s32 0, %v141
    %v143 = vrot.slane %v138, %v142
    %v145 = vmul.f32 %v132, %v143
    %v146 = vmul.f32 %v133, %v143
    %v147 = vlaneseq
    %v148 = vshrl.u32 %v147, 7
    %v149 = vsub.s32 0, %v148
    %v150 = vrot.slane %v134, %v149
    %v151 = vmul.f32 %v145, %v150
    %v152 = vmul.f32 %v146, %v150
    %vm153 = vcmask 261120
    %v154 = vsel %vm153, %v151, 0.0
    %155 = vadd.xlane.f32.xlu0 %v154
    %v156 = vpop.xlane.xlu0 %155
    %v157 = vsel %vm153, %v152, 0.0
    %158 = vadd.xlane.f32.xlu0 %v157
    %v159 = vpop.xlane.xlu0 %158
    %v161 = vsel %vm153, %v135, 0
    %v164 = vsel %vm153, %v145, 0
    %v167 = vsel %vm153, %v146, 0
    %169 = vmatprep.subr.mxu0 0.0
    %170 = vmatpush1.xpose.msra.mxu0 0.0
    %171 = vmatprep.subr.mxu0 0.0
    %172 = vmatpush1.xpose.msra.mxu0 0.0
    %173 = vmatprep.subr.mxu0 0.0
    %174 = vmatpush1.xpose.msra.mxu0 0.0
    %175 = vmatprep.subr.mxu0 0.0
    %176 = vmatpush1.xpose.msra.mxu0 0.0
    %177 = vmatprep.subr.mxu0 0.0
    %178 = vmatpush1.xpose.msra.mxu0 0.0
    %179 = vmatprep.subr.mxu0 0.0
    %180 = vmatpush1.xpose.msra.mxu0 0.0
    %181 = vmatprep.subr.mxu0 0.0
    %182 = vmatpush1.xpose.msra.mxu0 0.0
    %183 = vmatprep.subr.mxu0 0.0
    %184 = vmatpush1.xpose.msra.mxu0 0.0
    %185 = vmatprep.subr.mxu0 0.0
    %186 = vmatpush1.xpose.msra.mxu0 0.0
    %187 = vmatprep.subr.mxu0 0.0
    %188 = vmatpush1.xpose.msra.mxu0 0.0
    %189 = vmatprep.subr.mxu0 0.0
    %190 = vmatpush1.xpose.msra.mxu0 0.0
    %191 = vmatprep.subr.mxu0 0.0
    %192 = vmatpush1.xpose.msra.mxu0 0.0
    %193 = vmatprep.subr.mxu0 0.0
    %194 = vmatpush1.xpose.msra.mxu0 0.0
    %195 = vmatprep.subr.mxu0 0.0
    %196 = vmatpush1.xpose.msra.mxu0 0.0
    %197 = vmatprep.subr.mxu0 0.0
    %198 = vmatpush1.xpose.msra.mxu0 %v167
    %199 = vmatprep.subr.mxu0 0.0
    %200 = vmatpush1.xpose.msra.mxu0 %v164
    %201 = vmatprep.subr.mxu0 0.0
    %202 = vmatpush2.xpose.msra.mxu0 0.0
    %203 = vmatprep.subr.mxu0 0.0
    %204 = vmatpush2.xpose.msra.mxu0 0.0
    %205 = vmatprep.subr.mxu0 0.0
    %206 = vmatpush2.xpose.msra.mxu0 0.0
    %207 = vmatprep.subr.mxu0 0.0
    %208 = vmatpush2.xpose.msra.mxu0 0.0
    %209 = vmatprep.subr.mxu0 0.0
    %210 = vmatpush2.xpose.msra.mxu0 0.0
    %211 = vmatprep.subr.mxu0 0.0
    %212 = vmatpush2.xpose.msra.mxu0 0.0
    %213 = vmatprep.subr.mxu0 0.0
    %214 = vmatpush2.xpose.msra.mxu0 0.0
    %215 = vmatprep.subr.mxu0 0.0
    %216 = vmatpush2.xpose.msra.mxu0 0.0
    %217 = vmatprep.subr.mxu0 0.0
    %218 = vmatpush2.xpose.msra.mxu0 0.0
    %219 = vmatprep.subr.mxu0 0.0
    %220 = vmatpush2.xpose.msra.mxu0 0.0
    %221 = vmatprep.subr.mxu0 0.0
    %222 = vmatpush2.xpose.msra.mxu0 0.0
    %223 = vmatprep.subr.mxu0 0.0
    %224 = vmatpush2.xpose.msra.mxu0 0.0
    %225 = vmatprep.subr.mxu0 0.0
    %226 = vmatpush2.xpose.msra.mxu0 0.0
    %227 = vmatprep.subr.mxu0 0.0
    %228 = vmatpush2.xpose.msra.mxu0 0.0
    %229 = vmatprep.subr.mxu0 0.0
    %230 = vmatpush2.xpose.msra.mxu0 0.0
    %231 = vmatprep.subr.mxu0 0.0
    %232 = vmatpush2.xpose.msra.mxu0 0.0
    %233 = vmatprep.mubr.f32.mxu0 0.0
    %234 = vmatmul.mubr.f32.gmra.mxu0 %v161
    %v235 = vpop.f32.mrf.mxu0
    %v236 = vadd.f32 0.0, %v235
    %v237 = vpop.f32.mrf.mxu0
    %238 = vdwg.mxu0
    %v239 = vlaneseq
    %v240 = vshrl.u32 %v239, 7
    %v241 = vsub.s32 0, %v240
    %v242 = vrot.slane %v236, %v241
    %v243 = vadd.f32 %v156, %v242
    %v244 = vadd.f32 %v159, %v242
    %v245 = vmul.f32 %v243, 0.2
    %v246 = vmul.f32 %v244, 0.2
    %v247 = vmax.f32 %v243, %v245
    %v248 = vmax.f32 %v244, %v246
    %v249 = vmul.f32 %v247, 1.442695
    %v250 = vpow.pop %v249
    %v251 = vmul.f32 %v248, 1.442695
    %v252 = vpow.pop %v251
    %v253 = vmul.f32 %v250, %v73
    %v254 = vmul.f32 %v252, %v74
    %v255 = vsel %vm77, %v253, 0.0
    %256 = vadd.xlane.f32.xlu0 %v255
    %v257 = vpop.xlane.xlu0 %256
    %v258 = vsel %vm77, %v254, 0.0
    %259 = vadd.xlane.f32.xlu0 %v258
    %v260 = vpop.xlane.xlu0 %259
    %v261 = vadd.f32 %v257, 1e-09
    %v262 = vadd.f32 %v260, 1e-09
    %v263 = vrcp.pop %v261
    %v264 = vmul.f32 %v253, %v263
    %v265 = vrcp.pop %v262
    %v266 = vmul.f32 %v254, %v265
    %v268 = vsel %vm77, %v264, 0
    %v271 = vsel %vm77, %v266, 0
    %273 = vmatprep.subr.mxu0 0.0
    %274 = vmatpush1.msra.mxu0 0.0
    %275 = vmatprep.subr.mxu0 0.0
    %276 = vmatpush1.msra.mxu0 0.0
    %277 = vmatprep.subr.mxu0 0.0
    %278 = vmatpush1.msra.mxu0 0.0
    %279 = vmatprep.subr.mxu0 0.0
    %280 = vmatpush1.msra.mxu0 0.0
    %281 = vmatprep.subr.mxu0 0.0
    %282 = vmatpush1.msra.mxu0 0.0
    %283 = vmatprep.subr.mxu0 0.0
    %284 = vmatpush1.msra.mxu0 0.0
    %285 = vmatprep.subr.mxu0 0.0
    %286 = vmatpush1.msra.mxu0 0.0
    %287 = vmatprep.subr.mxu0 0.0
    %288 = vmatpush1.msra.mxu0 0.0
    %289 = vmatprep.subr.mxu0 0.0
    %290 = vmatpush1.msra.mxu0 0.0
    %291 = vmatprep.subr.mxu0 0.0
    %292 = vmatpush1.msra.mxu0 0.0
    %293 = vmatprep.subr.mxu0 0.0
    %294 = vmatpush1.msra.mxu0 0.0
    %295 = vmatprep.subr.mxu0 0.0
    %296 = vmatpush1.msra.mxu0 0.0
    %297 = vmatprep.subr.mxu0 0.0
    %298 = vmatpush1.msra.mxu0 0.0
    %299 = vmatprep.subr.mxu0 0.0
    %300 = vmatpush1.msra.mxu0 0.0
    %301 = vmatprep.subr.mxu0 0.0
    %302 = vmatpush1.msra.mxu0 %v146
    %303 = vmatprep.subr.mxu0 0.0
    %304 = vmatpush1.msra.mxu0 %v145
    %305 = vmatprep.subr.mxu0 0.0
    %306 = vmatpush2.msra.mxu0 0.0
    %307 = vmatprep.subr.mxu0 0.0
    %308 = vmatpush2.msra.mxu0 0.0
    %309 = vmatprep.subr.mxu0 0.0
    %310 = vmatpush2.msra.mxu0 0.0
    %311 = vmatprep.subr.mxu0 0.0
    %312 = vmatpush2.msra.mxu0 0.0
    %313 = vmatprep.subr.mxu0 0.0
    %314 = vmatpush2.msra.mxu0 0.0
    %315 = vmatprep.subr.mxu0 0.0
    %316 = vmatpush2.msra.mxu0 0.0
    %317 = vmatprep.subr.mxu0 0.0
    %318 = vmatpush2.msra.mxu0 0.0
    %319 = vmatprep.subr.mxu0 0.0
    %320 = vmatpush2.msra.mxu0 0.0
    %321 = vmatprep.subr.mxu0 0.0
    %322 = vmatpush2.msra.mxu0 0.0
    %323 = vmatprep.subr.mxu0 0.0
    %324 = vmatpush2.msra.mxu0 0.0
    %325 = vmatprep.subr.mxu0 0.0
    %326 = vmatpush2.msra.mxu0 0.0
    %327 = vmatprep.subr.mxu0 0.0
    %328 = vmatpush2.msra.mxu0 0.0
    %329 = vmatprep.subr.mxu0 0.0
    %330 = vmatpush2.msra.mxu0 0.0
    %331 = vmatprep.subr.mxu0 0.0
    %332 = vmatpush2.msra.mxu0 0.0
    %333 = vmatprep.subr.mxu0 0.0
    %334 = vmatpush2.msra.mxu0 0.0
    %335 = vmatprep.subr.mxu0 0.0
    %336 = vmatpush2.msra.mxu0 0.0
    %337 = vmatprep.mubr.f32.mxu0 0.0
    %338 = vmatmul.mubr.f32.gmra.mxu0 %v268
    %v339 = vpop.f32.mrf.mxu0
    %v340 = vadd.f32 0.0, %v339
    %v341 = vpop.f32.mrf.mxu0
    %342 = vmatprep.mubr.f32.mxu0 0.0
    %343 = vmatmul.mubr.f32.gmra.mxu0 %v271
    %v344 = vpop.f32.mrf.mxu0
    %v345 = vadd.f32 0.0, %v344
    %v346 = vpop.f32.mrf.mxu0
    %347 = vdwg.mxu0
    %vm348 = vcmp.gt.f32.partialorder %v340, 0.0
    %vm349 = vcmp.gt.f32.partialorder %v345, 0.0
    %v350 = vmin.f32 %v340, 0.0
    %v351 = vmin.f32 %v345, 0.0
    %v352 = vmul.f32 %v350, 1.442695
    %v353 = vpow.pop %v352
    %v354 = vmul.f32 %v351, 1.442695
    %v355 = vpow.pop %v354
    %v356 = vsub.f32 %v353, 1.0
    %v357 = vsub.f32 %v355, 1.0
    %v358 = vsel %vm348, %v340, %v356
    %v359 = vsel %vm349, %v345, %v357
    %v360 = vlaneseq
    %v361 = vshrl.u32 %v360, 7
    %v362 = vsub.s32 1, %v361
    %v363 = vrot.slane %v134, %v362
    %365 = vrot.lane.b32.xlu0 %v363, 32
    %v366 = vpop.permute.xlu0 %365
    %v368 = vmul.f32 %v145, %v366
    %v369 = vmul.f32 %v146, %v366
    %372 = vrot.lane.b32.xlu0 %v368, 96
    %v373 = vpop.permute.xlu0 %372
    %374 = vrot.lane.b32.xlu0 %v369, 96
    %v375 = vpop.permute.xlu0 %374
    %v378 = vsel %vm153, %v373, 0.0
    %379 = vadd.xlane.f32.xlu0 %v378
    %v380 = vpop.xlane.xlu0 %379
    %v381 = vsel %vm153, %v375, 0.0
    %382 = vadd.xlane.f32.xlu0 %v381
    %v383 = vpop.xlane.xlu0 %382
    %v384 = vrot.slane %v135, 1
    %385 = vrot.lane.b32.xlu0 %v145, 96
    %v386 = vpop.permute.xlu0 %385
    %387 = vrot.lane.b32.xlu0 %v146, 96
    %v388 = vpop.permute.xlu0 %387
    %v389 = vsel %vm153, %v384, 0
    %v391 = vsel %vm153, %v386, 0
    %v393 = vsel %vm153, %v388, 0
    %395 = vmatprep.subr.mxu0 0.0
    %396 = vmatpush1.xpose.msra.mxu0 0.0
    %397 = vmatprep.subr.mxu0 0.0
    %398 = vmatpush1.xpose.msra.mxu0 0.0
    %399 = vmatprep.subr.mxu0 0.0
    %400 = vmatpush1.xpose.msra.mxu0 0.0
    %401 = vmatprep.subr.mxu0 0.0
    %402 = vmatpush1.xpose.msra.mxu0 0.0
    %403 = vmatprep.subr.mxu0 0.0
    %404 = vmatpush1.xpose.msra.mxu0 0.0
    %405 = vmatprep.subr.mxu0 0.0
    %406 = vmatpush1.xpose.msra.mxu0 0.0
    %407 = vmatprep.subr.mxu0 0.0
    %408 = vmatpush1.xpose.msra.mxu0 0.0
    %409 = vmatprep.subr.mxu0 0.0
    %410 = vmatpush1.xpose.msra.mxu0 0.0
    %411 = vmatprep.subr.mxu0 0.0
    %412 = vmatpush1.xpose.msra.mxu0 0.0
    %413 = vmatprep.subr.mxu0 0.0
    %414 = vmatpush1.xpose.msra.mxu0 0.0
    %415 = vmatprep.subr.mxu0 0.0
    %416 = vmatpush1.xpose.msra.mxu0 0.0
    %417 = vmatprep.subr.mxu0 0.0
    %418 = vmatpush1.xpose.msra.mxu0 0.0
    %419 = vmatprep.subr.mxu0 0.0
    %420 = vmatpush1.xpose.msra.mxu0 0.0
    %421 = vmatprep.subr.mxu0 0.0
    %422 = vmatpush1.xpose.msra.mxu0 0.0
    %423 = vmatprep.subr.mxu0 0.0
    %424 = vmatpush1.xpose.msra.mxu0 %v393
    %425 = vmatprep.subr.mxu0 0.0
    %426 = vmatpush1.xpose.msra.mxu0 %v391
    %427 = vmatprep.subr.mxu0 0.0
    %428 = vmatpush2.xpose.msra.mxu0 0.0
    %429 = vmatprep.subr.mxu0 0.0
    %430 = vmatpush2.xpose.msra.mxu0 0.0
    %431 = vmatprep.subr.mxu0 0.0
    %432 = vmatpush2.xpose.msra.mxu0 0.0
    %433 = vmatprep.subr.mxu0 0.0
    %434 = vmatpush2.xpose.msra.mxu0 0.0
    %435 = vmatprep.subr.mxu0 0.0
    %436 = vmatpush2.xpose.msra.mxu0 0.0
    %437 = vmatprep.subr.mxu0 0.0
    %438 = vmatpush2.xpose.msra.mxu0 0.0
    %439 = vmatprep.subr.mxu0 0.0
    %440 = vmatpush2.xpose.msra.mxu0 0.0
    %441 = vmatprep.subr.mxu0 0.0
    %442 = vmatpush2.xpose.msra.mxu0 0.0
    %443 = vmatprep.subr.mxu0 0.0
    %444 = vmatpush2.xpose.msra.mxu0 0.0
    %445 = vmatprep.subr.mxu0 0.0
    %446 = vmatpush2.xpose.msra.mxu0 0.0
    %447 = vmatprep.subr.mxu0 0.0
    %448 = vmatpush2.xpose.msra.mxu0 0.0
    %449 = vmatprep.subr.mxu0 0.0
    %450 = vmatpush2.xpose.msra.mxu0 0.0
    %451 = vmatprep.subr.mxu0 0.0
    %452 = vmatpush2.xpose.msra.mxu0 0.0
    %453 = vmatprep.subr.mxu0 0.0
    %454 = vmatpush2.xpose.msra.mxu0 0.0
    %455 = vmatprep.subr.mxu0 0.0
    %456 = vmatpush2.xpose.msra.mxu0 0.0
    %457 = vmatprep.subr.mxu0 0.0
    %458 = vmatpush2.xpose.msra.mxu0 0.0
    %459 = vmatprep.mubr.f32.mxu0 0.0
    %460 = vmatmul.mubr.f32.gmra.mxu0 %v389
    %v461 = vpop.f32.mrf.mxu0
    %v462 = vadd.f32 0.0, %v461
    %v463 = vpop.f32.mrf.mxu0
    %464 = vdwg.mxu0
    %v465 = vlaneseq
    %v466 = vshrl.u32 %v465, 7
    %v467 = vsub.s32 0, %v466
    %v468 = vrot.slane %v462, %v467
    %v469 = vadd.f32 %v380, %v468
    %v470 = vadd.f32 %v383, %v468
    %v471 = vmul.f32 %v469, 0.2
    %v472 = vmul.f32 %v470, 0.2
    %v473 = vmax.f32 %v469, %v471
    %v474 = vmax.f32 %v470, %v472
    %v475 = vmul.f32 %v473, 1.442695
    %v476 = vpow.pop %v475
    %v477 = vmul.f32 %v474, 1.442695
    %v478 = vpow.pop %v477
    %v479 = vmul.f32 %v476, %v73
    %v480 = vmul.f32 %v478, %v74
    %v481 = vsel %vm77, %v479, 0.0
    %482 = vadd.xlane.f32.xlu0 %v481
    %v483 = vpop.xlane.xlu0 %482
    %v484 = vsel %vm77, %v480, 0.0
    %485 = vadd.xlane.f32.xlu0 %v484
    %v486 = vpop.xlane.xlu0 %485
    %v487 = vadd.f32 %v483, 1e-09
    %v488 = vadd.f32 %v486, 1e-09
    %v489 = vrcp.pop %v487
    %v490 = vmul.f32 %v479, %v489
    %v491 = vrcp.pop %v488
    %v492 = vmul.f32 %v480, %v491
    %v496 = vsel %vm77, %v490, 0
    %v499 = vsel %vm77, %v492, 0
    %501 = vmatprep.subr.mxu0 0.0
    %502 = vmatpush1.msra.mxu0 0.0
    %503 = vmatprep.subr.mxu0 0.0
    %504 = vmatpush1.msra.mxu0 0.0
    %505 = vmatprep.subr.mxu0 0.0
    %506 = vmatpush1.msra.mxu0 0.0
    %507 = vmatprep.subr.mxu0 0.0
    %508 = vmatpush1.msra.mxu0 0.0
    %509 = vmatprep.subr.mxu0 0.0
    %510 = vmatpush1.msra.mxu0 0.0
    %511 = vmatprep.subr.mxu0 0.0
    %512 = vmatpush1.msra.mxu0 0.0
    %513 = vmatprep.subr.mxu0 0.0
    %514 = vmatpush1.msra.mxu0 0.0
    %515 = vmatprep.subr.mxu0 0.0
    %516 = vmatpush1.msra.mxu0 0.0
    %517 = vmatprep.subr.mxu0 0.0
    %518 = vmatpush1.msra.mxu0 0.0
    %519 = vmatprep.subr.mxu0 0.0
    %520 = vmatpush1.msra.mxu0 0.0
    %521 = vmatprep.subr.mxu0 0.0
    %522 = vmatpush1.msra.mxu0 0.0
    %523 = vmatprep.subr.mxu0 0.0
    %524 = vmatpush1.msra.mxu0 0.0
    %525 = vmatprep.subr.mxu0 0.0
    %526 = vmatpush1.msra.mxu0 0.0
    %527 = vmatprep.subr.mxu0 0.0
    %528 = vmatpush1.msra.mxu0 0.0
    %529 = vmatprep.subr.mxu0 0.0
    %530 = vmatpush1.msra.mxu0 %v388
    %531 = vmatprep.subr.mxu0 0.0
    %532 = vmatpush1.msra.mxu0 %v386
    %533 = vmatprep.subr.mxu0 0.0
    %534 = vmatpush2.msra.mxu0 0.0
    %535 = vmatprep.subr.mxu0 0.0
    %536 = vmatpush2.msra.mxu0 0.0
    %537 = vmatprep.subr.mxu0 0.0
    %538 = vmatpush2.msra.mxu0 0.0
    %539 = vmatprep.subr.mxu0 0.0
    %540 = vmatpush2.msra.mxu0 0.0
    %541 = vmatprep.subr.mxu0 0.0
    %542 = vmatpush2.msra.mxu0 0.0
    %543 = vmatprep.subr.mxu0 0.0
    %544 = vmatpush2.msra.mxu0 0.0
    %545 = vmatprep.subr.mxu0 0.0
    %546 = vmatpush2.msra.mxu0 0.0
    %547 = vmatprep.subr.mxu0 0.0
    %548 = vmatpush2.msra.mxu0 0.0
    %549 = vmatprep.subr.mxu0 0.0
    %550 = vmatpush2.msra.mxu0 0.0
    %551 = vmatprep.subr.mxu0 0.0
    %552 = vmatpush2.msra.mxu0 0.0
    %553 = vmatprep.subr.mxu0 0.0
    %554 = vmatpush2.msra.mxu0 0.0
    %555 = vmatprep.subr.mxu0 0.0
    %556 = vmatpush2.msra.mxu0 0.0
    %557 = vmatprep.subr.mxu0 0.0
    %558 = vmatpush2.msra.mxu0 0.0
    %559 = vmatprep.subr.mxu0 0.0
    %560 = vmatpush2.msra.mxu0 0.0
    %561 = vmatprep.subr.mxu0 0.0
    %562 = vmatpush2.msra.mxu0 0.0
    %563 = vmatprep.subr.mxu0 0.0
    %564 = vmatpush2.msra.mxu0 0.0
    %565 = vmatprep.mubr.f32.mxu0 0.0
    %566 = vmatmul.mubr.f32.gmra.mxu0 %v496
    %v567 = vpop.f32.mrf.mxu0
    %v568 = vadd.f32 0.0, %v567
    %v569 = vpop.f32.mrf.mxu0
    %570 = vmatprep.mubr.f32.mxu0 0.0
    %571 = vmatmul.mubr.f32.gmra.mxu0 %v499
    %v572 = vpop.f32.mrf.mxu0
    %v573 = vadd.f32 0.0, %v572
    %v574 = vpop.f32.mrf.mxu0
    %575 = vdwg.mxu0
    %vm576 = vcmp.gt.f32.partialorder %v568, 0.0
    %vm577 = vcmp.gt.f32.partialorder %v573, 0.0
    %v578 = vmin.f32 %v568, 0.0
    %v579 = vmin.f32 %v573, 0.0
    %v580 = vmul.f32 %v578, 1.442695
    %v581 = vpow.pop %v580
    %v582 = vmul.f32 %v579, 1.442695
    %v583 = vpow.pop %v582
    %v584 = vsub.f32 %v581, 1.0
    %v585 = vsub.f32 %v583, 1.0
    %v586 = vsel %vm576, %v568, %v584
    %v587 = vsel %vm577, %v573, %v585
    %590 = vrot.lane.b32.xlu0 %v586, 32
    %v591 = vpop.permute.xlu0 %590
    %592 = vrot.lane.b32.xlu0 %v587, 32
    %v593 = vpop.permute.xlu0 %592
    %v596 = vsel %vm153, %v358, %v591
    %v597 = vsel %vm153, %v359, %v593
    %v598 = vld [vmem:[%s5] sm:$0xff]
    %v599 = vld [vmem:[%s5 + $0x8] sm:$0xff]
    %v600 = vld [vmem:[%s5 + $0x10] sm:$0xff]
    %v601 = vld [vmem:[%s5 + $0x18] sm:$0xff]
    %v602 = vld [vmem:[%s5 + $0x20] sm:$0xff]
    %v603 = vld [vmem:[%s5 + $0x28] sm:$0xff]
    %v604 = vld [vmem:[%s5 + $0x30] sm:$0xff]
    %v605 = vld [vmem:[%s5 + $0x38] sm:$0xff]
    %vm606 = vcmask 523264
    %v608 = vsel %vm606, %v596, 0
    %v611 = vsel %vm606, %v597, 0
    %613 = vmatprep.subr.mxu0 0.0
    %614 = vmatpush1.msra.mxu0 0.0
    %615 = vmatprep.subr.mxu0 0.0
    %616 = vmatpush1.msra.mxu0 0.0
    %617 = vmatprep.subr.mxu0 0.0
    %618 = vmatpush1.msra.mxu0 0.0
    %619 = vmatprep.subr.mxu0 0.0
    %620 = vmatpush1.msra.mxu0 0.0
    %621 = vmatprep.subr.mxu0 0.0
    %622 = vmatpush1.msra.mxu0 0.0
    %623 = vmatprep.subr.mxu0 0.0
    %624 = vmatpush1.msra.mxu0 0.0
    %625 = vmatprep.subr.mxu0 0.0
    %626 = vmatpush1.msra.mxu0 0.0
    %627 = vmatprep.subr.mxu0 0.0
    %628 = vmatpush1.msra.mxu0 0.0
    %629 = vmatprep.subr.mxu0 0.0
    %630 = vmatpush1.msra.mxu0 %v605
    %631 = vmatprep.subr.mxu0 0.0
    %632 = vmatpush1.msra.mxu0 %v604
    %633 = vmatprep.subr.mxu0 0.0
    %634 = vmatpush1.msra.mxu0 %v603
    %635 = vmatprep.subr.mxu0 0.0
    %636 = vmatpush1.msra.mxu0 %v602
    %637 = vmatprep.subr.mxu0 0.0
    %638 = vmatpush1.msra.mxu0 %v601
    %639 = vmatprep.subr.mxu0 0.0
    %640 = vmatpush1.msra.mxu0 %v600
    %641 = vmatprep.subr.mxu0 0.0
    %642 = vmatpush1.msra.mxu0 %v599
    %643 = vmatprep.subr.mxu0 0.0
    %644 = vmatpush1.msra.mxu0 %v598
    %645 = vmatprep.subr.mxu0 0.0
    %646 = vmatpush2.msra.mxu0 0.0
    %647 = vmatprep.subr.mxu0 0.0
    %648 = vmatpush2.msra.mxu0 0.0
    %649 = vmatprep.subr.mxu0 0.0
    %650 = vmatpush2.msra.mxu0 0.0
    %651 = vmatprep.subr.mxu0 0.0
    %652 = vmatpush2.msra.mxu0 0.0
    %653 = vmatprep.subr.mxu0 0.0
    %654 = vmatpush2.msra.mxu0 0.0
    %655 = vmatprep.subr.mxu0 0.0
    %656 = vmatpush2.msra.mxu0 0.0
    %657 = vmatprep.subr.mxu0 0.0
    %658 = vmatpush2.msra.mxu0 0.0
    %659 = vmatprep.subr.mxu0 0.0
    %660 = vmatpush2.msra.mxu0 0.0
    %661 = vmatprep.subr.mxu0 0.0
    %662 = vmatpush2.msra.mxu0 0.0
    %663 = vmatprep.subr.mxu0 0.0
    %664 = vmatpush2.msra.mxu0 0.0
    %665 = vmatprep.subr.mxu0 0.0
    %666 = vmatpush2.msra.mxu0 0.0
    %667 = vmatprep.subr.mxu0 0.0
    %668 = vmatpush2.msra.mxu0 0.0
    %669 = vmatprep.subr.mxu0 0.0
    %670 = vmatpush2.msra.mxu0 0.0
    %671 = vmatprep.subr.mxu0 0.0
    %672 = vmatpush2.msra.mxu0 0.0
    %673 = vmatprep.subr.mxu0 0.0
    %674 = vmatpush2.msra.mxu0 0.0
    %675 = vmatprep.subr.mxu0 0.0
    %676 = vmatpush2.msra.mxu0 0.0
    %677 = vmatprep.mubr.f32.mxu0 0.0
    %678 = vmatmul.mubr.f32.gmra.mxu0 %v608
    %v679 = vpop.f32.mrf.mxu0
    %v680 = vadd.f32 0.0, %v679
    %v681 = vpop.f32.mrf.mxu0
    %682 = vmatprep.mubr.f32.mxu0 0.0
    %683 = vmatmul.mubr.f32.gmra.mxu0 %v611
    %v684 = vpop.f32.mrf.mxu0
    %v685 = vadd.f32 0.0, %v684
    %v686 = vpop.f32.mrf.mxu0
    %687 = vdwg.mxu0
    %v688 = vlaneseq
    %v689 = vshrl.u32 %v688, 7
    %v690 = vsub.s32 0, %v689
    %v691 = vrot.slane %v136, %v690
    %v692 = vmul.f32 %v680, %v691
    %v693 = vmul.f32 %v685, %v691
    %v694 = vsel %vm153, %v692, 0.0
    %695 = vadd.xlane.f32.xlu0 %v694
    %v696 = vpop.xlane.xlu0 %695
    %v697 = vsel %vm153, %v693, 0.0
    %698 = vadd.xlane.f32.xlu0 %v697
    %v699 = vpop.xlane.xlu0 %698
    %v701 = vsel %vm153, %v137, 0
    %v704 = vsel %vm153, %v680, 0
    %v707 = vsel %vm153, %v685, 0
    %709 = vmatprep.subr.mxu0 0.0
    %710 = vmatpush1.xpose.msra.mxu0 0.0
    %711 = vmatprep.subr.mxu0 0.0
    %712 = vmatpush1.xpose.msra.mxu0 0.0
    %713 = vmatprep.subr.mxu0 0.0
    %714 = vmatpush1.xpose.msra.mxu0 0.0
    %715 = vmatprep.subr.mxu0 0.0
    %716 = vmatpush1.xpose.msra.mxu0 0.0
    %717 = vmatprep.subr.mxu0 0.0
    %718 = vmatpush1.xpose.msra.mxu0 0.0
    %719 = vmatprep.subr.mxu0 0.0
    %720 = vmatpush1.xpose.msra.mxu0 0.0
    %721 = vmatprep.subr.mxu0 0.0
    %722 = vmatpush1.xpose.msra.mxu0 0.0
    %723 = vmatprep.subr.mxu0 0.0
    %724 = vmatpush1.xpose.msra.mxu0 0.0
    %725 = vmatprep.subr.mxu0 0.0
    %726 = vmatpush1.xpose.msra.mxu0 0.0
    %727 = vmatprep.subr.mxu0 0.0
    %728 = vmatpush1.xpose.msra.mxu0 0.0
    %729 = vmatprep.subr.mxu0 0.0
    %730 = vmatpush1.xpose.msra.mxu0 0.0
    %731 = vmatprep.subr.mxu0 0.0
    %732 = vmatpush1.xpose.msra.mxu0 0.0
    %733 = vmatprep.subr.mxu0 0.0
    %734 = vmatpush1.xpose.msra.mxu0 0.0
    %735 = vmatprep.subr.mxu0 0.0
    %736 = vmatpush1.xpose.msra.mxu0 0.0
    %737 = vmatprep.subr.mxu0 0.0
    %738 = vmatpush1.xpose.msra.mxu0 %v707
    %739 = vmatprep.subr.mxu0 0.0
    %740 = vmatpush1.xpose.msra.mxu0 %v704
    %741 = vmatprep.subr.mxu0 0.0
    %742 = vmatpush2.xpose.msra.mxu0 0.0
    %743 = vmatprep.subr.mxu0 0.0
    %744 = vmatpush2.xpose.msra.mxu0 0.0
    %745 = vmatprep.subr.mxu0 0.0
    %746 = vmatpush2.xpose.msra.mxu0 0.0
    %747 = vmatprep.subr.mxu0 0.0
    %748 = vmatpush2.xpose.msra.mxu0 0.0
    %749 = vmatprep.subr.mxu0 0.0
    %750 = vmatpush2.xpose.msra.mxu0 0.0
    %751 = vmatprep.subr.mxu0 0.0
    %752 = vmatpush2.xpose.msra.mxu0 0.0
    %753 = vmatprep.subr.mxu0 0.0
    %754 = vmatpush2.xpose.msra.mxu0 0.0
    %755 = vmatprep.subr.mxu0 0.0
    %756 = vmatpush2.xpose.msra.mxu0 0.0
    %757 = vmatprep.subr.mxu0 0.0
    %758 = vmatpush2.xpose.msra.mxu0 0.0
    %759 = vmatprep.subr.mxu0 0.0
    %760 = vmatpush2.xpose.msra.mxu0 0.0
    %761 = vmatprep.subr.mxu0 0.0
    %762 = vmatpush2.xpose.msra.mxu0 0.0
    %763 = vmatprep.subr.mxu0 0.0
    %764 = vmatpush2.xpose.msra.mxu0 0.0
    %765 = vmatprep.subr.mxu0 0.0
    %766 = vmatpush2.xpose.msra.mxu0 0.0
    %767 = vmatprep.subr.mxu0 0.0
    %768 = vmatpush2.xpose.msra.mxu0 0.0
    %769 = vmatprep.subr.mxu0 0.0
    %770 = vmatpush2.xpose.msra.mxu0 0.0
    %771 = vmatprep.subr.mxu0 0.0
    %772 = vmatpush2.xpose.msra.mxu0 0.0
    %773 = vmatprep.mubr.f32.mxu0 0.0
    %774 = vmatmul.mubr.f32.gmra.mxu0 %v701
    %v775 = vpop.f32.mrf.mxu0
    %v776 = vadd.f32 0.0, %v775
    %v777 = vpop.f32.mrf.mxu0
    %778 = vdwg.mxu0
    %v779 = vlaneseq
    %v780 = vshrl.u32 %v779, 7
    %v781 = vsub.s32 0, %v780
    %v782 = vrot.slane %v776, %v781
    %v783 = vadd.f32 %v696, %v782
    %v784 = vadd.f32 %v699, %v782
    %v785 = vmul.f32 %v783, 0.2
    %v786 = vmul.f32 %v784, 0.2
    %v787 = vmax.f32 %v783, %v785
    %v788 = vmax.f32 %v784, %v786
    %v789 = vmul.f32 %v787, 1.442695
    %v790 = vpow.pop %v789
    %v791 = vmul.f32 %v788, 1.442695
    %v792 = vpow.pop %v791
    %v793 = vmul.f32 %v790, %v73
    %v794 = vmul.f32 %v792, %v74
    %v795 = vsel %vm77, %v793, 0.0
    %796 = vadd.xlane.f32.xlu0 %v795
    %v797 = vpop.xlane.xlu0 %796
    %v798 = vsel %vm77, %v794, 0.0
    %799 = vadd.xlane.f32.xlu0 %v798
    %v800 = vpop.xlane.xlu0 %799
    %v801 = vadd.f32 %v797, 1e-09
    %v802 = vadd.f32 %v800, 1e-09
    %v803 = vrcp.pop %v801
    %v804 = vmul.f32 %v793, %v803
    %v805 = vrcp.pop %v802
    %v806 = vmul.f32 %v794, %v805
    %v808 = vsel %vm77, %v804, 0
    %v811 = vsel %vm77, %v806, 0
    %813 = vmatprep.subr.mxu0 0.0
    %814 = vmatpush1.msra.mxu0 0.0
    %815 = vmatprep.subr.mxu0 0.0
    %816 = vmatpush1.msra.mxu0 0.0
    %817 = vmatprep.subr.mxu0 0.0
    %818 = vmatpush1.msra.mxu0 0.0
    %819 = vmatprep.subr.mxu0 0.0
    %820 = vmatpush1.msra.mxu0 0.0
    %821 = vmatprep.subr.mxu0 0.0
    %822 = vmatpush1.msra.mxu0 0.0
    %823 = vmatprep.subr.mxu0 0.0
    %824 = vmatpush1.msra.mxu0 0.0
    %825 = vmatprep.subr.mxu0 0.0
    %826 = vmatpush1.msra.mxu0 0.0
    %827 = vmatprep.subr.mxu0 0.0
    %828 = vmatpush1.msra.mxu0 0.0
    %829 = vmatprep.subr.mxu0 0.0
    %830 = vmatpush1.msra.mxu0 0.0
    %831 = vmatprep.subr.mxu0 0.0
    %832 = vmatpush1.msra.mxu0 0.0
    %833 = vmatprep.subr.mxu0 0.0
    %834 = vmatpush1.msra.mxu0 0.0
    %835 = vmatprep.subr.mxu0 0.0
    %836 = vmatpush1.msra.mxu0 0.0
    %837 = vmatprep.subr.mxu0 0.0
    %838 = vmatpush1.msra.mxu0 0.0
    %839 = vmatprep.subr.mxu0 0.0
    %840 = vmatpush1.msra.mxu0 0.0
    %841 = vmatprep.subr.mxu0 0.0
    %842 = vmatpush1.msra.mxu0 %v685
    %843 = vmatprep.subr.mxu0 0.0
    %844 = vmatpush1.msra.mxu0 %v680
    %845 = vmatprep.subr.mxu0 0.0
    %846 = vmatpush2.msra.mxu0 0.0
    %847 = vmatprep.subr.mxu0 0.0
    %848 = vmatpush2.msra.mxu0 0.0
    %849 = vmatprep.subr.mxu0 0.0
    %850 = vmatpush2.msra.mxu0 0.0
    %851 = vmatprep.subr.mxu0 0.0
    %852 = vmatpush2.msra.mxu0 0.0
    %853 = vmatprep.subr.mxu0 0.0
    %854 = vmatpush2.msra.mxu0 0.0
    %855 = vmatprep.subr.mxu0 0.0
    %856 = vmatpush2.msra.mxu0 0.0
    %857 = vmatprep.subr.mxu0 0.0
    %858 = vmatpush2.msra.mxu0 0.0
    %859 = vmatprep.subr.mxu0 0.0
    %860 = vmatpush2.msra.mxu0 0.0
    %861 = vmatprep.subr.mxu0 0.0
    %862 = vmatpush2.msra.mxu0 0.0
    %863 = vmatprep.subr.mxu0 0.0
    %864 = vmatpush2.msra.mxu0 0.0
    %865 = vmatprep.subr.mxu0 0.0
    %866 = vmatpush2.msra.mxu0 0.0
    %867 = vmatprep.subr.mxu0 0.0
    %868 = vmatpush2.msra.mxu0 0.0
    %869 = vmatprep.subr.mxu0 0.0
    %870 = vmatpush2.msra.mxu0 0.0
    %871 = vmatprep.subr.mxu0 0.0
    %872 = vmatpush2.msra.mxu0 0.0
    %873 = vmatprep.subr.mxu0 0.0
    %874 = vmatpush2.msra.mxu0 0.0
    %875 = vmatprep.subr.mxu0 0.0
    %876 = vmatpush2.msra.mxu0 0.0
    %877 = vmatprep.mubr.f32.mxu0 0.0
    %878 = vmatmul.mubr.f32.gmra.mxu0 %v808
    %v879 = vpop.f32.mrf.mxu0
    %v880 = vadd.f32 0.0, %v879
    %v881 = vpop.f32.mrf.mxu0
    %882 = vmatprep.mubr.f32.mxu0 0.0
    %883 = vmatmul.mubr.f32.gmra.mxu0 %v811
    %v884 = vpop.f32.mrf.mxu0
    %v885 = vadd.f32 0.0, %v884
    %v886 = vpop.f32.mrf.mxu0
    %887 = vdwg.mxu0
    %vm888 = vcmp.gt.f32.partialorder %v880, 0.0
    %vm889 = vcmp.gt.f32.partialorder %v885, 0.0
    %v890 = vmin.f32 %v880, 0.0
    %v891 = vmin.f32 %v885, 0.0
    %v892 = vmul.f32 %v890, 1.442695
    %v893 = vpow.pop %v892
    %v894 = vmul.f32 %v891, 1.442695
    %v895 = vpow.pop %v894
    %v896 = vsub.f32 %v893, 1.0
    %v897 = vsub.f32 %v895, 1.0
    %v898 = vsel %vm888, %v880, %v896
    %v899 = vsel %vm889, %v885, %v897
    %v900 = vlaneseq
    %v901 = vshrl.u32 %v900, 7
    %v902 = vsub.s32 1, %v901
    %v903 = vrot.slane %v136, %v902
    %905 = vrot.lane.b32.xlu0 %v903, 32
    %v906 = vpop.permute.xlu0 %905
    %v908 = vmul.f32 %v680, %v906
    %v909 = vmul.f32 %v685, %v906
    %912 = vrot.lane.b32.xlu0 %v908, 96
    %v913 = vpop.permute.xlu0 %912
    %914 = vrot.lane.b32.xlu0 %v909, 96
    %v915 = vpop.permute.xlu0 %914
    %v918 = vsel %vm153, %v913, 0.0
    %919 = vadd.xlane.f32.xlu0 %v918
    %v920 = vpop.xlane.xlu0 %919
    %v921 = vsel %vm153, %v915, 0.0
    %922 = vadd.xlane.f32.xlu0 %v921
    %v923 = vpop.xlane.xlu0 %922
    %v924 = vrot.slane %v137, 1
    %925 = vrot.lane.b32.xlu0 %v680, 96
    %v926 = vpop.permute.xlu0 %925
    %927 = vrot.lane.b32.xlu0 %v685, 96
    %v928 = vpop.permute.xlu0 %927
    %v929 = vsel %vm153, %v924, 0
    %v931 = vsel %vm153, %v926, 0
    %v933 = vsel %vm153, %v928, 0
    %935 = vmatprep.subr.mxu0 0.0
    %936 = vmatpush1.xpose.msra.mxu0 0.0
    %937 = vmatprep.subr.mxu0 0.0
    %938 = vmatpush1.xpose.msra.mxu0 0.0
    %939 = vmatprep.subr.mxu0 0.0
    %940 = vmatpush1.xpose.msra.mxu0 0.0
    %941 = vmatprep.subr.mxu0 0.0
    %942 = vmatpush1.xpose.msra.mxu0 0.0
    %943 = vmatprep.subr.mxu0 0.0
    %944 = vmatpush1.xpose.msra.mxu0 0.0
    %945 = vmatprep.subr.mxu0 0.0
    %946 = vmatpush1.xpose.msra.mxu0 0.0
    %947 = vmatprep.subr.mxu0 0.0
    %948 = vmatpush1.xpose.msra.mxu0 0.0
    %949 = vmatprep.subr.mxu0 0.0
    %950 = vmatpush1.xpose.msra.mxu0 0.0
    %951 = vmatprep.subr.mxu0 0.0
    %952 = vmatpush1.xpose.msra.mxu0 0.0
    %953 = vmatprep.subr.mxu0 0.0
    %954 = vmatpush1.xpose.msra.mxu0 0.0
    %955 = vmatprep.subr.mxu0 0.0
    %956 = vmatpush1.xpose.msra.mxu0 0.0
    %957 = vmatprep.subr.mxu0 0.0
    %958 = vmatpush1.xpose.msra.mxu0 0.0
    %959 = vmatprep.subr.mxu0 0.0
    %960 = vmatpush1.xpose.msra.mxu0 0.0
    %961 = vmatprep.subr.mxu0 0.0
    %962 = vmatpush1.xpose.msra.mxu0 0.0
    %963 = vmatprep.subr.mxu0 0.0
    %964 = vmatpush1.xpose.msra.mxu0 %v933
    %965 = vmatprep.subr.mxu0 0.0
    %966 = vmatpush1.xpose.msra.mxu0 %v931
    %967 = vmatprep.subr.mxu0 0.0
    %968 = vmatpush2.xpose.msra.mxu0 0.0
    %969 = vmatprep.subr.mxu0 0.0
    %970 = vmatpush2.xpose.msra.mxu0 0.0
    %971 = vmatprep.subr.mxu0 0.0
    %972 = vmatpush2.xpose.msra.mxu0 0.0
    %973 = vmatprep.subr.mxu0 0.0
    %974 = vmatpush2.xpose.msra.mxu0 0.0
    %975 = vmatprep.subr.mxu0 0.0
    %976 = vmatpush2.xpose.msra.mxu0 0.0
    %977 = vmatprep.subr.mxu0 0.0
    %978 = vmatpush2.xpose.msra.mxu0 0.0
    %979 = vmatprep.subr.mxu0 0.0
    %980 = vmatpush2.xpose.msra.mxu0 0.0
    %981 = vmatprep.subr.mxu0 0.0
    %982 = vmatpush2.xpose.msra.mxu0 0.0
    %983 = vmatprep.subr.mxu0 0.0
    %984 = vmatpush2.xpose.msra.mxu0 0.0
    %985 = vmatprep.subr.mxu0 0.0
    %986 = vmatpush2.xpose.msra.mxu0 0.0
    %987 = vmatprep.subr.mxu0 0.0
    %988 = vmatpush2.xpose.msra.mxu0 0.0
    %989 = vmatprep.subr.mxu0 0.0
    %990 = vmatpush2.xpose.msra.mxu0 0.0
    %991 = vmatprep.subr.mxu0 0.0
    %992 = vmatpush2.xpose.msra.mxu0 0.0
    %993 = vmatprep.subr.mxu0 0.0
    %994 = vmatpush2.xpose.msra.mxu0 0.0
    %995 = vmatprep.subr.mxu0 0.0
    %996 = vmatpush2.xpose.msra.mxu0 0.0
    %997 = vmatprep.subr.mxu0 0.0
    %998 = vmatpush2.xpose.msra.mxu0 0.0
    %999 = vmatprep.mubr.f32.mxu0 0.0
    %1000 = vmatmul.mubr.f32.gmra.mxu0 %v929
    %v1001 = vpop.f32.mrf.mxu0
    %v1002 = vadd.f32 0.0, %v1001
    %v1003 = vpop.f32.mrf.mxu0
    %1004 = vdwg.mxu0
    %v1005 = vlaneseq
    %v1006 = vshrl.u32 %v1005, 7
    %v1007 = vsub.s32 0, %v1006
    %v1008 = vrot.slane %v1002, %v1007
    %v1009 = vadd.f32 %v920, %v1008
    %v1010 = vadd.f32 %v923, %v1008
    %v1011 = vmul.f32 %v1009, 0.2
    %v1012 = vmul.f32 %v1010, 0.2
    %v1013 = vmax.f32 %v1009, %v1011
    %v1014 = vmax.f32 %v1010, %v1012
    %v1015 = vmul.f32 %v1013, 1.442695
    %v1016 = vpow.pop %v1015
    %v1017 = vmul.f32 %v1014, 1.442695
    %v1018 = vpow.pop %v1017
    %v1019 = vmul.f32 %v1016, %v73
    %v1020 = vmul.f32 %v1018, %v74
    %v1021 = vsel %vm77, %v1019, 0.0
    %1022 = vadd.xlane.f32.xlu0 %v1021
    %v1023 = vpop.xlane.xlu0 %1022
    %v1024 = vsel %vm77, %v1020, 0.0
    %1025 = vadd.xlane.f32.xlu0 %v1024
    %v1026 = vpop.xlane.xlu0 %1025
    %v1027 = vadd.f32 %v1023, 1e-09
    %v1028 = vadd.f32 %v1026, 1e-09
    %v1029 = vrcp.pop %v1027
    %v1030 = vmul.f32 %v1019, %v1029
    %v1031 = vrcp.pop %v1028
    %v1032 = vmul.f32 %v1020, %v1031
    %v1036 = vsel %vm77, %v1030, 0
    %v1039 = vsel %vm77, %v1032, 0
    %1041 = vmatprep.subr.mxu0 0.0
    %1042 = vmatpush1.msra.mxu0 0.0
    %1043 = vmatprep.subr.mxu0 0.0
    %1044 = vmatpush1.msra.mxu0 0.0
    %1045 = vmatprep.subr.mxu0 0.0
    %1046 = vmatpush1.msra.mxu0 0.0
    %1047 = vmatprep.subr.mxu0 0.0
    %1048 = vmatpush1.msra.mxu0 0.0
    %1049 = vmatprep.subr.mxu0 0.0
    %1050 = vmatpush1.msra.mxu0 0.0
    %1051 = vmatprep.subr.mxu0 0.0
    %1052 = vmatpush1.msra.mxu0 0.0
    %1053 = vmatprep.subr.mxu0 0.0
    %1054 = vmatpush1.msra.mxu0 0.0
    %1055 = vmatprep.subr.mxu0 0.0
    %1056 = vmatpush1.msra.mxu0 0.0
    %1057 = vmatprep.subr.mxu0 0.0
    %1058 = vmatpush1.msra.mxu0 0.0
    %1059 = vmatprep.subr.mxu0 0.0
    %1060 = vmatpush1.msra.mxu0 0.0
    %1061 = vmatprep.subr.mxu0 0.0
    %1062 = vmatpush1.msra.mxu0 0.0
    %1063 = vmatprep.subr.mxu0 0.0
    %1064 = vmatpush1.msra.mxu0 0.0
    %1065 = vmatprep.subr.mxu0 0.0
    %1066 = vmatpush1.msra.mxu0 0.0
    %1067 = vmatprep.subr.mxu0 0.0
    %1068 = vmatpush1.msra.mxu0 0.0
    %1069 = vmatprep.subr.mxu0 0.0
    %1070 = vmatpush1.msra.mxu0 %v928
    %1071 = vmatprep.subr.mxu0 0.0
    %1072 = vmatpush1.msra.mxu0 %v926
    %1073 = vmatprep.subr.mxu0 0.0
    %1074 = vmatpush2.msra.mxu0 0.0
    %1075 = vmatprep.subr.mxu0 0.0
    %1076 = vmatpush2.msra.mxu0 0.0
    %1077 = vmatprep.subr.mxu0 0.0
    %1078 = vmatpush2.msra.mxu0 0.0
    %1079 = vmatprep.subr.mxu0 0.0
    %1080 = vmatpush2.msra.mxu0 0.0
    %1081 = vmatprep.subr.mxu0 0.0
    %1082 = vmatpush2.msra.mxu0 0.0
    %1083 = vmatprep.subr.mxu0 0.0
    %1084 = vmatpush2.msra.mxu0 0.0
    %1085 = vmatprep.subr.mxu0 0.0
    %1086 = vmatpush2.msra.mxu0 0.0
    %1087 = vmatprep.subr.mxu0 0.0
    %1088 = vmatpush2.msra.mxu0 0.0
    %1089 = vmatprep.subr.mxu0 0.0
    %1090 = vmatpush2.msra.mxu0 0.0
    %1091 = vmatprep.subr.mxu0 0.0
    %1092 = vmatpush2.msra.mxu0 0.0
    %1093 = vmatprep.subr.mxu0 0.0
    %1094 = vmatpush2.msra.mxu0 0.0
    %1095 = vmatprep.subr.mxu0 0.0
    %1096 = vmatpush2.msra.mxu0 0.0
    %1097 = vmatprep.subr.mxu0 0.0
    %1098 = vmatpush2.msra.mxu0 0.0
    %1099 = vmatprep.subr.mxu0 0.0
    %1100 = vmatpush2.msra.mxu0 0.0
    %1101 = vmatprep.subr.mxu0 0.0
    %1102 = vmatpush2.msra.mxu0 0.0
    %1103 = vmatprep.subr.mxu0 0.0
    %1104 = vmatpush2.msra.mxu0 0.0
    %1105 = vmatprep.mubr.f32.mxu0 0.0
    %1106 = vmatmul.mubr.f32.gmra.mxu0 %v1036
    %v1107 = vpop.f32.mrf.mxu0
    %v1108 = vadd.f32 0.0, %v1107
    %v1109 = vpop.f32.mrf.mxu0
    %1110 = vmatprep.mubr.f32.mxu0 0.0
    %1111 = vmatmul.mubr.f32.gmra.mxu0 %v1039
    %v1112 = vpop.f32.mrf.mxu0
    %v1113 = vadd.f32 0.0, %v1112
    %v1114 = vpop.f32.mrf.mxu0
    %1115 = vdwg.mxu0
    %vm1116 = vcmp.gt.f32.partialorder %v1108, 0.0
    %vm1117 = vcmp.gt.f32.partialorder %v1113, 0.0
    %v1118 = vmin.f32 %v1108, 0.0
    %v1119 = vmin.f32 %v1113, 0.0
    %v1120 = vmul.f32 %v1118, 1.442695
    %v1121 = vpow.pop %v1120
    %v1122 = vmul.f32 %v1119, 1.442695
    %v1123 = vpow.pop %v1122
    %v1124 = vsub.f32 %v1121, 1.0
    %v1125 = vsub.f32 %v1123, 1.0
    %v1126 = vsel %vm1116, %v1108, %v1124
    %v1127 = vsel %vm1117, %v1113, %v1125
    %1130 = vrot.lane.b32.xlu0 %v1126, 32
    %v1131 = vpop.permute.xlu0 %1130
    %1132 = vrot.lane.b32.xlu0 %v1127, 32
    %v1133 = vpop.permute.xlu0 %1132
    %v1136 = vsel %vm153, %v898, %v1131
    %v1137 = vsel %vm153, %v899, %v1133
    %v1138 = vld [vmem:[%s8] sm:$0xff]
    %v1139 = vld [vmem:[%s8 + $0x8] sm:$0xff]
    %v1140 = vld [vmem:[%s8 + $0x10] sm:$0xff]
    %v1141 = vld [vmem:[%s8 + $0x18] sm:$0xff]
    %v1142 = vld [vmem:[%s8 + $0x20] sm:$0xff]
    %v1143 = vld [vmem:[%s8 + $0x28] sm:$0xff]
    %v1144 = vld [vmem:[%s8 + $0x30] sm:$0xff]
    %v1145 = vld [vmem:[%s8 + $0x38] sm:$0xff]
    %v1147 = vsel %vm606, %v1136, 0
    %v1150 = vsel %vm606, %v1137, 0
    %1152 = vmatprep.subr.mxu0 0.0
    %1153 = vmatpush1.msra.mxu0 0.0
    %1154 = vmatprep.subr.mxu0 0.0
    %1155 = vmatpush1.msra.mxu0 0.0
    %1156 = vmatprep.subr.mxu0 0.0
    %1157 = vmatpush1.msra.mxu0 0.0
    %1158 = vmatprep.subr.mxu0 0.0
    %1159 = vmatpush1.msra.mxu0 0.0
    %1160 = vmatprep.subr.mxu0 0.0
    %1161 = vmatpush1.msra.mxu0 0.0
    %1162 = vmatprep.subr.mxu0 0.0
    %1163 = vmatpush1.msra.mxu0 0.0
    %1164 = vmatprep.subr.mxu0 0.0
    %1165 = vmatpush1.msra.mxu0 0.0
    %1166 = vmatprep.subr.mxu0 0.0
    %1167 = vmatpush1.msra.mxu0 0.0
    %1168 = vmatprep.subr.mxu0 0.0
    %1169 = vmatpush1.msra.mxu0 %v1145
    %1170 = vmatprep.subr.mxu0 0.0
    %1171 = vmatpush1.msra.mxu0 %v1144
    %1172 = vmatprep.subr.mxu0 0.0
    %1173 = vmatpush1.msra.mxu0 %v1143
    %1174 = vmatprep.subr.mxu0 0.0
    %1175 = vmatpush1.msra.mxu0 %v1142
    %1176 = vmatprep.subr.mxu0 0.0
    %1177 = vmatpush1.msra.mxu0 %v1141
    %1178 = vmatprep.subr.mxu0 0.0
    %1179 = vmatpush1.msra.mxu0 %v1140
    %1180 = vmatprep.subr.mxu0 0.0
    %1181 = vmatpush1.msra.mxu0 %v1139
    %1182 = vmatprep.subr.mxu0 0.0
    %1183 = vmatpush1.msra.mxu0 %v1138
    %1184 = vmatprep.subr.mxu0 0.0
    %1185 = vmatpush2.msra.mxu0 0.0
    %1186 = vmatprep.subr.mxu0 0.0
    %1187 = vmatpush2.msra.mxu0 0.0
    %1188 = vmatprep.subr.mxu0 0.0
    %1189 = vmatpush2.msra.mxu0 0.0
    %1190 = vmatprep.subr.mxu0 0.0
    %1191 = vmatpush2.msra.mxu0 0.0
    %1192 = vmatprep.subr.mxu0 0.0
    %1193 = vmatpush2.msra.mxu0 0.0
    %1194 = vmatprep.subr.mxu0 0.0
    %1195 = vmatpush2.msra.mxu0 0.0
    %1196 = vmatprep.subr.mxu0 0.0
    %1197 = vmatpush2.msra.mxu0 0.0
    %1198 = vmatprep.subr.mxu0 0.0
    %1199 = vmatpush2.msra.mxu0 0.0
    %1200 = vmatprep.subr.mxu0 0.0
    %1201 = vmatpush2.msra.mxu0 0.0
    %1202 = vmatprep.subr.mxu0 0.0
    %1203 = vmatpush2.msra.mxu0 0.0
    %1204 = vmatprep.subr.mxu0 0.0
    %1205 = vmatpush2.msra.mxu0 0.0
    %1206 = vmatprep.subr.mxu0 0.0
    %1207 = vmatpush2.msra.mxu0 0.0
    %1208 = vmatprep.subr.mxu0 0.0
    %1209 = vmatpush2.msra.mxu0 0.0
    %1210 = vmatprep.subr.mxu0 0.0
    %1211 = vmatpush2.msra.mxu0 0.0
    %1212 = vmatprep.subr.mxu0 0.0
    %1213 = vmatpush2.msra.mxu0 0.0
    %1214 = vmatprep.subr.mxu0 0.0
    %1215 = vmatpush2.msra.mxu0 0.0
    %1216 = vmatprep.mubr.f32.mxu0 0.0
    %1217 = vmatmul.mubr.f32.gmra.mxu0 %v1147
    %v1218 = vpop.f32.mrf.mxu0
    %v1219 = vadd.f32 0.0, %v1218
    %v1220 = vpop.f32.mrf.mxu0
    %1221 = vmatprep.mubr.f32.mxu0 0.0
    %1222 = vmatmul.mubr.f32.gmra.mxu0 %v1150
    %v1223 = vpop.f32.mrf.mxu0
    %v1224 = vadd.f32 0.0, %v1223
    %v1225 = vpop.f32.mrf.mxu0
    %1226 = vdwg.mxu0
    %v1227 = vld [vmem:[%s9] sm:$0x1]
    %v1228 = vld [vmem:[%s10] sm:$0x1]
    %v1230 = vlaneseq
    %v1231 = vshrl.u32 %v1230, 7
    %v1232 = vsub.s32 0, %v1231
    %v1233 = vrot.slane %v1227, %v1232
    %v1235 = vmul.f32 %v1219, %v1233
    %v1236 = vmul.f32 %v1224, %v1233
    %v1237 = vsel %vm153, %v1235, 0.0
    %1238 = vadd.xlane.f32.xlu0 %v1237
    %v1239 = vpop.xlane.xlu0 %1238
    %v1240 = vsel %vm153, %v1236, 0.0
    %1241 = vadd.xlane.f32.xlu0 %v1240
    %v1242 = vpop.xlane.xlu0 %1241
    %v1244 = vsel %vm153, %v1228, 0
    %v1247 = vsel %vm153, %v1219, 0
    %v1250 = vsel %vm153, %v1224, 0
    %1252 = vmatprep.subr.mxu0 0.0
    %1253 = vmatpush1.xpose.msra.mxu0 0.0
    %1254 = vmatprep.subr.mxu0 0.0
    %1255 = vmatpush1.xpose.msra.mxu0 0.0
    %1256 = vmatprep.subr.mxu0 0.0
    %1257 = vmatpush1.xpose.msra.mxu0 0.0
    %1258 = vmatprep.subr.mxu0 0.0
    %1259 = vmatpush1.xpose.msra.mxu0 0.0
    %1260 = vmatprep.subr.mxu0 0.0
    %1261 = vmatpush1.xpose.msra.mxu0 0.0
    %1262 = vmatprep.subr.mxu0 0.0
    %1263 = vmatpush1.xpose.msra.mxu0 0.0
    %1264 = vmatprep.subr.mxu0 0.0
    %1265 = vmatpush1.xpose.msra.mxu0 0.0
    %1266 = vmatprep.subr.mxu0 0.0
    %1267 = vmatpush1.xpose.msra.mxu0 0.0
    %1268 = vmatprep.subr.mxu0 0.0
    %1269 = vmatpush1.xpose.msra.mxu0 0.0
    %1270 = vmatprep.subr.mxu0 0.0
    %1271 = vmatpush1.xpose.msra.mxu0 0.0
    %1272 = vmatprep.subr.mxu0 0.0
    %1273 = vmatpush1.xpose.msra.mxu0 0.0
    %1274 = vmatprep.subr.mxu0 0.0
    %1275 = vmatpush1.xpose.msra.mxu0 0.0
    %1276 = vmatprep.subr.mxu0 0.0
    %1277 = vmatpush1.xpose.msra.mxu0 0.0
    %1278 = vmatprep.subr.mxu0 0.0
    %1279 = vmatpush1.xpose.msra.mxu0 0.0
    %1280 = vmatprep.subr.mxu0 0.0
    %1281 = vmatpush1.xpose.msra.mxu0 %v1250
    %1282 = vmatprep.subr.mxu0 0.0
    %1283 = vmatpush1.xpose.msra.mxu0 %v1247
    %1284 = vmatprep.subr.mxu0 0.0
    %1285 = vmatpush2.xpose.msra.mxu0 0.0
    %1286 = vmatprep.subr.mxu0 0.0
    %1287 = vmatpush2.xpose.msra.mxu0 0.0
    %1288 = vmatprep.subr.mxu0 0.0
    %1289 = vmatpush2.xpose.msra.mxu0 0.0
    %1290 = vmatprep.subr.mxu0 0.0
    %1291 = vmatpush2.xpose.msra.mxu0 0.0
    %1292 = vmatprep.subr.mxu0 0.0
    %1293 = vmatpush2.xpose.msra.mxu0 0.0
    %1294 = vmatprep.subr.mxu0 0.0
    %1295 = vmatpush2.xpose.msra.mxu0 0.0
    %1296 = vmatprep.subr.mxu0 0.0
    %1297 = vmatpush2.xpose.msra.mxu0 0.0
    %1298 = vmatprep.subr.mxu0 0.0
    %1299 = vmatpush2.xpose.msra.mxu0 0.0
    %1300 = vmatprep.subr.mxu0 0.0
    %1301 = vmatpush2.xpose.msra.mxu0 0.0
    %1302 = vmatprep.subr.mxu0 0.0
    %1303 = vmatpush2.xpose.msra.mxu0 0.0
    %1304 = vmatprep.subr.mxu0 0.0
    %1305 = vmatpush2.xpose.msra.mxu0 0.0
    %1306 = vmatprep.subr.mxu0 0.0
    %1307 = vmatpush2.xpose.msra.mxu0 0.0
    %1308 = vmatprep.subr.mxu0 0.0
    %1309 = vmatpush2.xpose.msra.mxu0 0.0
    %1310 = vmatprep.subr.mxu0 0.0
    %1311 = vmatpush2.xpose.msra.mxu0 0.0
    %1312 = vmatprep.subr.mxu0 0.0
    %1313 = vmatpush2.xpose.msra.mxu0 0.0
    %1314 = vmatprep.subr.mxu0 0.0
    %1315 = vmatpush2.xpose.msra.mxu0 0.0
    %1316 = vmatprep.mubr.f32.mxu0 0.0
    %1317 = vmatmul.mubr.f32.gmra.mxu0 %v1244
    %v1318 = vpop.f32.mrf.mxu0
    %v1319 = vadd.f32 0.0, %v1318
    %v1320 = vpop.f32.mrf.mxu0
    %1321 = vdwg.mxu0
    %v1322 = vlaneseq
    %v1323 = vshrl.u32 %v1322, 7
    %v1324 = vsub.s32 0, %v1323
    %v1325 = vrot.slane %v1319, %v1324
    %v1326 = vadd.f32 %v1239, %v1325
    %v1327 = vadd.f32 %v1242, %v1325
    %v1328 = vmul.f32 %v1326, 0.2
    %v1329 = vmul.f32 %v1327, 0.2
    %v1330 = vmax.f32 %v1326, %v1328
    %v1331 = vmax.f32 %v1327, %v1329
    %v1332 = vmul.f32 %v1330, 1.442695
    %v1333 = vpow.pop %v1332
    %v1334 = vmul.f32 %v1331, 1.442695
    %v1335 = vpow.pop %v1334
    %v1336 = vmul.f32 %v1333, %v73
    %v1337 = vmul.f32 %v1335, %v74
    %v1338 = vsel %vm77, %v1336, 0.0
    %1339 = vadd.xlane.f32.xlu0 %v1338
    %v1340 = vpop.xlane.xlu0 %1339
    %v1341 = vsel %vm77, %v1337, 0.0
    %1342 = vadd.xlane.f32.xlu0 %v1341
    %v1343 = vpop.xlane.xlu0 %1342
    %v1344 = vadd.f32 %v1340, 1e-09
    %v1345 = vadd.f32 %v1343, 1e-09
    %v1346 = vrcp.pop %v1344
    %v1347 = vmul.f32 %v1336, %v1346
    %v1348 = vrcp.pop %v1345
    %v1349 = vmul.f32 %v1337, %v1348
    %v1351 = vsel %vm77, %v1347, 0
    %v1354 = vsel %vm77, %v1349, 0
    %1356 = vmatprep.subr.mxu0 0.0
    %1357 = vmatpush1.msra.mxu0 0.0
    %1358 = vmatprep.subr.mxu0 0.0
    %1359 = vmatpush1.msra.mxu0 0.0
    %1360 = vmatprep.subr.mxu0 0.0
    %1361 = vmatpush1.msra.mxu0 0.0
    %1362 = vmatprep.subr.mxu0 0.0
    %1363 = vmatpush1.msra.mxu0 0.0
    %1364 = vmatprep.subr.mxu0 0.0
    %1365 = vmatpush1.msra.mxu0 0.0
    %1366 = vmatprep.subr.mxu0 0.0
    %1367 = vmatpush1.msra.mxu0 0.0
    %1368 = vmatprep.subr.mxu0 0.0
    %1369 = vmatpush1.msra.mxu0 0.0
    %1370 = vmatprep.subr.mxu0 0.0
    %1371 = vmatpush1.msra.mxu0 0.0
    %1372 = vmatprep.subr.mxu0 0.0
    %1373 = vmatpush1.msra.mxu0 0.0
    %1374 = vmatprep.subr.mxu0 0.0
    %1375 = vmatpush1.msra.mxu0 0.0
    %1376 = vmatprep.subr.mxu0 0.0
    %1377 = vmatpush1.msra.mxu0 0.0
    %1378 = vmatprep.subr.mxu0 0.0
    %1379 = vmatpush1.msra.mxu0 0.0
    %1380 = vmatprep.subr.mxu0 0.0
    %1381 = vmatpush1.msra.mxu0 0.0
    %1382 = vmatprep.subr.mxu0 0.0
    %1383 = vmatpush1.msra.mxu0 0.0
    %1384 = vmatprep.subr.mxu0 0.0
    %1385 = vmatpush1.msra.mxu0 %v1224
    %1386 = vmatprep.subr.mxu0 0.0
    %1387 = vmatpush1.msra.mxu0 %v1219
    %1388 = vmatprep.subr.mxu0 0.0
    %1389 = vmatpush2.msra.mxu0 0.0
    %1390 = vmatprep.subr.mxu0 0.0
    %1391 = vmatpush2.msra.mxu0 0.0
    %1392 = vmatprep.subr.mxu0 0.0
    %1393 = vmatpush2.msra.mxu0 0.0
    %1394 = vmatprep.subr.mxu0 0.0
    %1395 = vmatpush2.msra.mxu0 0.0
    %1396 = vmatprep.subr.mxu0 0.0
    %1397 = vmatpush2.msra.mxu0 0.0
    %1398 = vmatprep.subr.mxu0 0.0
    %1399 = vmatpush2.msra.mxu0 0.0
    %1400 = vmatprep.subr.mxu0 0.0
    %1401 = vmatpush2.msra.mxu0 0.0
    %1402 = vmatprep.subr.mxu0 0.0
    %1403 = vmatpush2.msra.mxu0 0.0
    %1404 = vmatprep.subr.mxu0 0.0
    %1405 = vmatpush2.msra.mxu0 0.0
    %1406 = vmatprep.subr.mxu0 0.0
    %1407 = vmatpush2.msra.mxu0 0.0
    %1408 = vmatprep.subr.mxu0 0.0
    %1409 = vmatpush2.msra.mxu0 0.0
    %1410 = vmatprep.subr.mxu0 0.0
    %1411 = vmatpush2.msra.mxu0 0.0
    %1412 = vmatprep.subr.mxu0 0.0
    %1413 = vmatpush2.msra.mxu0 0.0
    %1414 = vmatprep.subr.mxu0 0.0
    %1415 = vmatpush2.msra.mxu0 0.0
    %1416 = vmatprep.subr.mxu0 0.0
    %1417 = vmatpush2.msra.mxu0 0.0
    %1418 = vmatprep.subr.mxu0 0.0
    %1419 = vmatpush2.msra.mxu0 0.0
    %1420 = vmatprep.mubr.f32.mxu0 0.0
    %1421 = vmatmul.mubr.f32.gmra.mxu0 %v1351
    %v1422 = vpop.f32.mrf.mxu0
    %v1423 = vadd.f32 0.0, %v1422
    %v1424 = vpop.f32.mrf.mxu0
    %1425 = vmatprep.mubr.f32.mxu0 0.0
    %1426 = vmatmul.mubr.f32.gmra.mxu0 %v1354
    %v1427 = vpop.f32.mrf.mxu0
    %v1428 = vadd.f32 0.0, %v1427
    %v1429 = vpop.f32.mrf.mxu0
    %1430 = vdwg.mxu0
    %vm1431 = vcmp.gt.f32.partialorder %v1423, 0.0
    %vm1432 = vcmp.gt.f32.partialorder %v1428, 0.0
    %v1433 = vmin.f32 %v1423, 0.0
    %v1434 = vmin.f32 %v1428, 0.0
    %v1435 = vmul.f32 %v1433, 1.442695
    %v1436 = vpow.pop %v1435
    %v1437 = vmul.f32 %v1434, 1.442695
    %v1438 = vpow.pop %v1437
    %v1439 = vsub.f32 %v1436, 1.0
    %v1440 = vsub.f32 %v1438, 1.0
    %v1441 = vsel %vm1431, %v1423, %v1439
    %v1442 = vsel %vm1432, %v1428, %v1440
    %v1443 = vsel %vm153, %v1441, 0.0
    %v1444 = vsel %vm153, %v1442, 0.0
    %v1445 = vadd.f32 %v1443, %v1444
    %v1446 = vrot.slane %v1445, 4
    %v1447 = vadd.f32 %v1445, %v1446
    %v1448 = vrot.slane %v1447, 2
    %v1449 = vadd.f32 %v1447, %v1448
    %v1450 = vrot.slane %v1449, 1
    %v1451 = vadd.f32 %v1449, %v1450
    %v1452 = vrcp.pop 16.0
    %v1453 = vmul.f32 %v1451, %v1452
    %v1454 = vld [vmem:[%s11] sm:$0xff]
    %v1455 = vld [vmem:[%s11 + $0x8] sm:$0xff]
    %v1456 = vld [vmem:[%s11 + $0x10] sm:$0xff]
    %v1457 = vld [vmem:[%s11 + $0x18] sm:$0xff]
    %v1458 = vld [vmem:[%s12] sm:$0x1]
    %v1460 = vsel %vm153, %v1453, 0
    %1462 = vmatprep.subr.mxu0 0.0
    %1463 = vmatpush1.msra.mxu0 0.0
    %1464 = vmatprep.subr.mxu0 0.0
    %1465 = vmatpush1.msra.mxu0 0.0
    %1466 = vmatprep.subr.mxu0 0.0
    %1467 = vmatpush1.msra.mxu0 0.0
    %1468 = vmatprep.subr.mxu0 0.0
    %1469 = vmatpush1.msra.mxu0 0.0
    %1470 = vmatprep.subr.mxu0 0.0
    %1471 = vmatpush1.msra.mxu0 0.0
    %1472 = vmatprep.subr.mxu0 0.0
    %1473 = vmatpush1.msra.mxu0 0.0
    %1474 = vmatprep.subr.mxu0 0.0
    %1475 = vmatpush1.msra.mxu0 0.0
    %1476 = vmatprep.subr.mxu0 0.0
    %1477 = vmatpush1.msra.mxu0 0.0
    %1478 = vmatprep.subr.mxu0 0.0
    %1479 = vmatpush1.msra.mxu0 0.0
    %1480 = vmatprep.subr.mxu0 0.0
    %1481 = vmatpush1.msra.mxu0 0.0
    %1482 = vmatprep.subr.mxu0 0.0
    %1483 = vmatpush1.msra.mxu0 0.0
    %1484 = vmatprep.subr.mxu0 0.0
    %1485 = vmatpush1.msra.mxu0 0.0
    %1486 = vmatprep.subr.mxu0 0.0
    %1487 = vmatpush1.msra.mxu0 %v1457
    %1488 = vmatprep.subr.mxu0 0.0
    %1489 = vmatpush1.msra.mxu0 %v1456
    %1490 = vmatprep.subr.mxu0 0.0
    %1491 = vmatpush1.msra.mxu0 %v1455
    %1492 = vmatprep.subr.mxu0 0.0
    %1493 = vmatpush1.msra.mxu0 %v1454
    %1494 = vmatprep.subr.mxu0 0.0
    %1495 = vmatpush2.msra.mxu0 0.0
    %1496 = vmatprep.subr.mxu0 0.0
    %1497 = vmatpush2.msra.mxu0 0.0
    %1498 = vmatprep.subr.mxu0 0.0
    %1499 = vmatpush2.msra.mxu0 0.0
    %1500 = vmatprep.subr.mxu0 0.0
    %1501 = vmatpush2.msra.mxu0 0.0
    %1502 = vmatprep.subr.mxu0 0.0
    %1503 = vmatpush2.msra.mxu0 0.0
    %1504 = vmatprep.subr.mxu0 0.0
    %1505 = vmatpush2.msra.mxu0 0.0
    %1506 = vmatprep.subr.mxu0 0.0
    %1507 = vmatpush2.msra.mxu0 0.0
    %1508 = vmatprep.subr.mxu0 0.0
    %1509 = vmatpush2.msra.mxu0 0.0
    %1510 = vmatprep.subr.mxu0 0.0
    %1511 = vmatpush2.msra.mxu0 0.0
    %1512 = vmatprep.subr.mxu0 0.0
    %1513 = vmatpush2.msra.mxu0 0.0
    %1514 = vmatprep.subr.mxu0 0.0
    %1515 = vmatpush2.msra.mxu0 0.0
    %1516 = vmatprep.subr.mxu0 0.0
    %1517 = vmatpush2.msra.mxu0 0.0
    %1518 = vmatprep.subr.mxu0 0.0
    %1519 = vmatpush2.msra.mxu0 0.0
    %1520 = vmatprep.subr.mxu0 0.0
    %1521 = vmatpush2.msra.mxu0 0.0
    %1522 = vmatprep.subr.mxu0 0.0
    %1523 = vmatpush2.msra.mxu0 0.0
    %1524 = vmatprep.subr.mxu0 0.0
    %1525 = vmatpush2.msra.mxu0 0.0
    %1526 = vmatprep.mubr.f32.mxu0 0.0
    %1527 = vmatmul.mubr.f32.gmra.mxu0 %v1460
    %v1528 = vpop.f32.mrf.mxu0
    %v1529 = vadd.f32 %v1458, %v1528
    %v1530 = vpop.f32.mrf.mxu0
    %1531 = vdwg.mxu0
    %1532 = vst [vmem:[#allocation7] sm:$0x1] %v1529
    // Predicated region
    $region62: #{tpu_custom_call.1} parent=1 // pred_check
      _
    $region63: #{tpu_custom_call.1} parent=1 // pred_check_branch
      %1534 = sbr.rel (0) target = $region65
    $region64: #{tpu_custom_call.1} parent=1 // pred_region
      %s1536 = ssub.s32 16, 16
      %1537 = vsyncadd [#allocation4], %s1536
      %s1539 = sshll.u32 [#allocation7], 4
      %s1540 = int_to_ptr.vmem [resolvable:$true] %s1539
      %1542 = dma.vmem_to_hbm [thread:$0]  %s1540, 16, %s13, [#allocation4]
    $region65: #{tpu_custom_call.1} parent=1 // pred_fallthru
      _
    // Predicated region
    $region66: #{tpu_custom_call.1} parent=1 // pred_check
      _
    $region67: #{tpu_custom_call.1} parent=1 // pred_check_branch
      %1544 = sbr.rel (0) target = $region69
    $region68: #{tpu_custom_call.1} parent=1 // pred_region
      %1545 = dma.done [#allocation4], 16
    $region69: #{tpu_custom_call.1} parent=1 // pred_fallthru
      _
    %1546 = vsyncpa [#allocation3], 1
    %1547 = vsyncpa [#allocation6], 1
    %1548 = vsyncpa [#allocation4], 1

</llo_original>
